<compile_context>
chip_gen: v6e
topology: v6e:2x2x1
jax: 0.10.0
libtpu: 0.0.40
codegen_flags: <defaults>
</compile_context>

<pallas_src>
import math
import functools

import jax
import jax.numpy as jnp
from jax import lax
from jax.experimental import pallas as pl
from jax.experimental.pallas import tpu as pltpu


def transformer_kernel(x_ref, qscaled_ref, qres_ref, wk_ref, wv_ref, wfc_ref,
                       pvec_ref, w1_ref, b1_ref, w2_ref, out_ref,
                       *, H, D_k, D_v, BB, compute_dtype=None):
    """One grid step == one block of BB batch elements.  Everything in VMEM."""
    f32 = jnp.float32
    cast = (lambda a: a.astype(compute_dtype)) if compute_dtype is not None \
        else (lambda a: a)

    N, D = x_ref.shape                 # N = BB * S rows of this batch block
    S = N // BB
    T = qres_ref.shape[0]              # number of query tokens

    x2 = x_ref[...]                                                 # (BB*S, D)

    # --- K/V projections: one MXU matmul each over the whole batch block ---
    k_proj = jnp.dot(cast(x2), cast(wk_ref[...]),
                     preferred_element_type=f32)                    # (BB*S, H*D_k)
    v_proj = jnp.dot(cast(x2), cast(wv_ref[...]),
                     preferred_element_type=f32)                    # (BB*S, H*D_v)
    k3 = k_proj.reshape(BB, S, H * D_k)
    v3 = v_proj.reshape(BB, S, H * D_v)

    q_scaled = qscaled_ref[...]        # (T, H*D_k), already scaled by 1/sqrt(D_k)
    wfc = wfc_ref[...]                 # (H*D_v, D)

    # Residual of the attention block: the (shared) query tokens, tiled over BB.
    acc = jnp.broadcast_to(qres_ref[...][None], (BB, T, D)) \
             .reshape(BB * T, D).astype(f32)

    # --- per-head attention, batched over the batch-block dim ---
    # fc(concat_h o_h) == sum_h o_h @ Wfc[h*D_v:(h+1)*D_v]  -> no concatenate.
    for h in range(H):
        qh = q_scaled[:, h * D_k:(h + 1) * D_k]                     # (T, D_k)
        kh = k3[:, :, h * D_k:(h + 1) * D_k]                        # (BB, S, D_k)
        vh = v3[:, :, h * D_v:(h + 1) * D_v]                        # (BB, S, D_v)
        qb = jnp.broadcast_to(qh[None], (BB, T, D_k))               # (BB, T, D_k)

        s = jnp.einsum('btd,bsd->bts', cast(qb), cast(kh),
                       preferred_element_type=f32)                  # (BB, T, S)
        s = s - jnp.max(s, axis=-1, keepdims=True)
        e = jnp.exp(s)
        p = e * pl.reciprocal(jnp.sum(e, axis=-1, keepdims=True), approx=True)

        o = jnp.einsum('bts,bsv->btv', cast(p), cast(vh),
                       preferred_element_type=f32)                  # (BB, T, D_v)
        acc = acc + jnp.dot(cast(o.reshape(BB * T, D_v)),
                            cast(wfc[h * D_v:(h + 1) * D_v, :]),
                            preferred_element_type=f32)             # (BB*T, D)

    # --- packed per-channel parameters: ln1_g, ln1_b, b2, ln2_g, ln2_b ---
    pv = pvec_ref[...]                                              # (5, D)
    ln1_g, ln1_b = pv[0:1, :], pv[1:2, :]
    b2 = pv[2:3, :]
    ln2_g, ln2_b = pv[3:4, :], pv[4:5, :]

    def layer_norm(z, g, b):
        mu = jnp.mean(z, axis=-1, keepdims=True)
        c = z - mu
        var = jnp.mean(c * c, axis=-1, keepdims=True)
        return c * lax.rsqrt(var + 1e-6) * g + b

    y = layer_norm(acc, ln1_g, ln1_b)                               # (BB*T, D)

    # --- MLP: w2(relu(w1(y))) + residual, LayerNorm ---
    h1 = jnp.maximum(
        jnp.dot(cast(y), cast(w1_ref[...]), preferred_element_type=f32)
        + b1_ref[...], 0.0)                                         # (BB*T, D_inner)
    m = jnp.dot(cast(h1), cast(w2_ref[...]), preferred_element_type=f32) + b2
    out = layer_norm(m + y, ln2_g, ln2_b)                           # (BB*T, D)

    out_ref[...] = out.reshape(BB, T, D).astype(out_ref.dtype)


def transformer_forward(x, p, *, H, D_k, D_v, batch_block=None, compute_dtype=None):
    B, S, D = x.shape
    T = p["q"].shape[0]
    D_inner = p["w1"].shape[1]
    BB = B if batch_block is None else batch_block
    assert B % BB == 0, "batch_block must divide the batch size"

    # Hoisted, batch-invariant query projection with 1/sqrt(D_k) folded in.
    q_scaled = (p["q"] @ p["wq"]) * (1.0 / math.sqrt(D_k))          # (T, H*D_k)
    # Pack the small (1, D) per-channel parameters into a single input.
    pvec = jnp.concatenate([p["ln1_g"], p["ln1_b"], p["b2"],
                            p["ln2_g"], p["ln2_b"]], axis=0)        # (5, D)
    x_flat = x.reshape(B * S, D)

    kernel = functools.partial(transformer_kernel, H=H, D_k=D_k, D_v=D_v, BB=BB,
                               compute_dtype=compute_dtype)

    def full(shape):
        return pl.BlockSpec(shape, lambda i: (0,) * len(shape))

    return pl.pallas_call(
        kernel,
        out_shape=jax.ShapeDtypeStruct((B, T, D), x.dtype),
        grid=(B // BB,),
        in_specs=[
            pl.BlockSpec((BB * S, D), lambda i: (i, 0)),   # x rows of this block
            full((T, H * D_k)),                            # pre-scaled q projection
            full((T, D)),                                  # q tokens (residual)
            full((D, H * D_k)),                            # Wk
            full((D, H * D_v)),                            # Wv
            full((H * D_v, D)),                            # Wfc
            full((5, D)),                                  # ln1_g,ln1_b,b2,ln2_g,ln2_b
            full((D, D_inner)),                            # W1
            full((1, D_inner)),                            # b1
            full((D_inner, D)),                            # W2
        ],
        out_specs=pl.BlockSpec((BB, T, D), lambda i: (i, 0, 0)),
        compiler_params=pltpu.CompilerParams(
            dimension_semantics=("parallel",)),            # batch blocks independent
    )(x_flat, q_scaled, p["q"], p["wk"], p["wv"], p["wfc"], pvec,
      p["w1"], p["b1"], p["w2"])


def reference_forward(x, p, *, H, D_k, D_v):
    """Pure-JAX reference mirroring the PyTorch module (eval mode)."""
    B, S, D = x.shape
    T = p["q"].shape[0]
    q = (p["q"] @ p["wq"]).reshape(T, H, D_k).transpose(1, 0, 2)           # (H,T,Dk)
    k = (x @ p["wk"]).reshape(B, S, H, D_k).transpose(0, 2, 1, 3)          # (B,H,S,Dk)
    v = (x @ p["wv"]).reshape(B, S, H, D_v).transpose(0, 2, 1, 3)          # (B,H,S,Dv)
    scores = jnp.einsum("htd,bhsd->bhts", q / math.sqrt(D_k), k)
    attn = jax.nn.softmax(scores, axis=-1)
    o = jnp.einsum("bhts,bhsv->bhtv", attn, v)
    o = o.transpose(0, 2, 1, 3).reshape(B, T, H * D_v)
    y = o @ p["wfc"] + p["q"][None]

    def ln(z, g, b):
        m = z.mean(-1, keepdims=True)
        var = ((z - m) ** 2).mean(-1, keepdims=True)
        return (z - m) / jnp.sqrt(var + 1e-6) * g + b

    y = ln(y, p["ln1_g"], p["ln1_b"])
    h = jax.nn.relu(y @ p["w1"] + p["b1"])
    m2 = h @ p["w2"] + p["b2"]
    return ln(m2 + y, p["ln2_g"], p["ln2_b"])


def init_params(key, *, n_token, H, D, D_k, D_v, D_inner):
    ks = jax.random.split(key, 10)
    u = lambda k, shape, lim: jax.random.uniform(k, shape, jnp.float32, -lim, lim)
    return {
        # learnable query tokens, shared across batch
        "q":   u(ks[0], (n_token, D), math.sqrt(1.0 / D_k)),
        # linear weights stored as (in, out)
        "wq":  u(ks[1], (D, H * D_k), math.sqrt(1.0 / D)),
        "wk":  u(ks[2], (D, H * D_k), math.sqrt(1.0 / D)),
        "wv":  u(ks[3], (D, H * D_v), math.sqrt(1.0 / D)),
        "wfc": u(ks[4], (H * D_v, D), math.sqrt(1.0 / (H * D_v))),
        "ln1_g": jnp.ones((1, D), jnp.float32),
        "ln1_b": jnp.zeros((1, D), jnp.float32),
        "w1":  u(ks[5], (D, D_inner), math.sqrt(1.0 / D)),
        "b1":  u(ks[6], (1, D_inner), math.sqrt(1.0 / D)),
        "w2":  u(ks[7], (D_inner, D), math.sqrt(1.0 / D_inner)),
        "b2":  u(ks[8], (1, D), math.sqrt(1.0 / D_inner)),
        "ln2_g": jnp.ones((1, D), jnp.float32),
        "ln2_b": jnp.zeros((1, D), jnp.float32),
    }


if __name__ == "__main__":
    # Small, deterministic configuration (n_token chosen sublane-aligned).
    B, S = 2, 8
    n_token, H, D, D_k, D_v, D_inner = 8, 2, 32, 16, 16, 64

    key = jax.random.PRNGKey(0)
    kx, kp = jax.random.split(key)
    x = jax.random.normal(kx, (B, S, D), jnp.float32)
    params = init_params(kp, n_token=n_token, H=H, D=D, D_k=D_k, D_v=D_v,
                         D_inner=D_inner)

    out = transformer_forward(x, params, H=H, D_k=D_k, D_v=D_v)
    out = jax.block_until_ready(out)

    ref = reference_forward(x, params, H=H, D_k=D_k, D_v=D_v)
    assert out.shape == (B, n_token, D)
    # Tolerance budget is dominated by the approximate EUP reciprocal in the
    # softmax denominator; all matmuls accumulate in f32.
    assert jnp.allclose(out, ref, atol=5e-3, rtol=5e-3), "mismatch vs JAX reference"

    print("KERNEL_OK")
</pallas_src>

<mosaic_0001>
module attributes {stable_mosaic.version = 11 : i64} {
  func.func @transformer_kernel(%arg0: i32, %arg1: memref<16x32xf32, #tpu.memory_space<vmem>>, %arg2: memref<8x32xf32, #tpu.memory_space<vmem>>, %arg3: memref<8x32xf32, #tpu.memory_space<vmem>>, %arg4: memref<32x32xf32, #tpu.memory_space<vmem>>, %arg5: memref<32x32xf32, #tpu.memory_space<vmem>>, %arg6: memref<32x32xf32, #tpu.memory_space<vmem>>, %arg7: memref<5x32xf32, #tpu.memory_space<vmem>>, %arg8: memref<32x64xf32, #tpu.memory_space<vmem>>, %arg9: memref<1x64xf32, #tpu.memory_space<vmem>>, %arg10: memref<64x32xf32, #tpu.memory_space<vmem>>, %arg11: memref<2x8x32xf32, #tpu.memory_space<vmem>>) attributes {dimension_semantics = [#tpu.dimension_semantics<parallel>], iteration_bounds = array<i64: 1>, scalar_prefetch = 0 : i64, scratch_operands = 0 : i64, tpu.core_type = #tpu.core_type<tc>, window_params = [{transform_indices = @transform_0, window_bounds = array<i64: 16, 32>}, {pipeline_mode = #tpu.pipeline_mode<synchronous>, transform_indices = @transform_1, window_bounds = array<i64: 8, 32>}, {pipeline_mode = #tpu.pipeline_mode<synchronous>, transform_indices = @transform_2, window_bounds = array<i64: 8, 32>}, {pipeline_mode = #tpu.pipeline_mode<synchronous>, transform_indices = @transform_3, window_bounds = array<i64: 32, 32>}, {pipeline_mode = #tpu.pipeline_mode<synchronous>, transform_indices = @transform_4, window_bounds = array<i64: 32, 32>}, {pipeline_mode = #tpu.pipeline_mode<synchronous>, transform_indices = @transform_5, window_bounds = array<i64: 32, 32>}, {pipeline_mode = #tpu.pipeline_mode<synchronous>, transform_indices = @transform_6, window_bounds = array<i64: 5, 32>}, {pipeline_mode = #tpu.pipeline_mode<synchronous>, transform_indices = @transform_7, window_bounds = array<i64: 32, 64>}, {pipeline_mode = #tpu.pipeline_mode<synchronous>, transform_indices = @transform_8, window_bounds = array<i64: 1, 64>}, {pipeline_mode = #tpu.pipeline_mode<synchronous>, transform_indices = @transform_9, window_bounds = array<i64: 64, 32>}, {transform_indices = @transform_10, window_bounds = array<i64: 2, 8, 32>}]} {
    %c0 = arith.constant 0 : index
    %c0_0 = arith.constant 0 : index
    %0 = vector.load %arg1[%c0, %c0_0] : memref<16x32xf32, #tpu.memory_space<vmem>>, vector<16x32xf32>
    %c0_1 = arith.constant 0 : index
    %c0_2 = arith.constant 0 : index
    %1 = vector.load %arg4[%c0_1, %c0_2] : memref<32x32xf32, #tpu.memory_space<vmem>>, vector<32x32xf32>
    %cst = arith.constant dense<0.000000e+00> : vector<16x32xf32>
    %2 = tpu.matmul %0, %1, %cst {dimension_numbers = #tpu.dot_dimension_numbers<[1], [0], [0], [1], [0, 0, 1, 1], [], []>} : vector<16x32xf32>, vector<32x32xf32>, vector<16x32xf32> -> vector<16x32xf32>
    %c0_3 = arith.constant 0 : index
    %c0_4 = arith.constant 0 : index
    %3 = vector.load %arg5[%c0_3, %c0_4] : memref<32x32xf32, #tpu.memory_space<vmem>>, vector<32x32xf32>
    %cst_5 = arith.constant dense<0.000000e+00> : vector<16x32xf32>
    %4 = tpu.matmul %0, %3, %cst_5 {dimension_numbers = #tpu.dot_dimension_numbers<[1], [0], [0], [1], [0, 0, 1, 1], [], []>} : vector<16x32xf32>, vector<32x32xf32>, vector<16x32xf32> -> vector<16x32xf32>
    %5 = vector.shape_cast %2 : vector<16x32xf32> to vector<2x8x32xf32>
    %6 = vector.shape_cast %4 : vector<16x32xf32> to vector<2x8x32xf32>
    %c0_6 = arith.constant 0 : index
    %c0_7 = arith.constant 0 : index
    %7 = vector.load %arg2[%c0_6, %c0_7] : memref<8x32xf32, #tpu.memory_space<vmem>>, vector<8x32xf32>
    %c0_8 = arith.constant 0 : index
    %c0_9 = arith.constant 0 : index
    %8 = vector.load %arg6[%c0_8, %c0_9] : memref<32x32xf32, #tpu.memory_space<vmem>>, vector<32x32xf32>
    %c0_10 = arith.constant 0 : index
    %c0_11 = arith.constant 0 : index
    %9 = vector.load %arg3[%c0_10, %c0_11] : memref<8x32xf32, #tpu.memory_space<vmem>>, vector<8x32xf32>
    %10 = vector.shape_cast %9 : vector<8x32xf32> to vector<1x8x32xf32>
    %11 = vector.shape_cast %10 : vector<1x8x32xf32> to vector<1x8x32xf32>
    %12 = vector.broadcast %11 : vector<1x8x32xf32> to vector<2x8x32xf32>
    %13 = vector.shape_cast %12 : vector<2x8x32xf32> to vector<16x32xf32>
    %14 = vector.extract_strided_slice %7 {offsets = [0, 0], sizes = [8, 16], strides = [1, 1]} : vector<8x32xf32> to vector<8x16xf32>
    %15 = vector.extract_strided_slice %5 {offsets = [0, 0, 0], sizes = [2, 8, 16], strides = [1, 1, 1]} : vector<2x8x32xf32> to vector<2x8x16xf32>
    %16 = vector.extract_strided_slice %6 {offsets = [0, 0, 0], sizes = [2, 8, 16], strides = [1, 1, 1]} : vector<2x8x32xf32> to vector<2x8x16xf32>
    %17 = vector.shape_cast %14 : vector<8x16xf32> to vector<1x8x16xf32>
    %18 = vector.shape_cast %17 : vector<1x8x16xf32> to vector<1x8x16xf32>
    %19 = vector.broadcast %18 : vector<1x8x16xf32> to vector<2x8x16xf32>
    "tpu.trace_start"() <{level = 10 : i32, message = "btd,bsd->bts"}> : () -> ()
    %cst_12 = arith.constant dense<0.000000e+00> : vector<2x8x8xf32>
    %20 = tpu.matmul %19, %15, %cst_12 {dimension_numbers = #tpu.dot_dimension_numbers<[2], [2], [1], [1], [0, 0, 0, 1, 1, 1], [0], [0]>} : vector<2x8x16xf32>, vector<2x8x16xf32>, vector<2x8x8xf32> -> vector<2x8x8xf32>
    "tpu.trace_stop"() : () -> ()
    %cst_13 = arith.constant dense<0xFF800000> : vector<2x8xf32>
    %21 = vector.multi_reduction <maximumf>, %20, %cst_13 [2] : vector<2x8x8xf32> to vector<2x8xf32>
    %22 = vector.shape_cast %21 : vector<2x8xf32> to vector<2x8x1xf32>
    %23 = vector.broadcast %22 : vector<2x8x1xf32> to vector<2x8x8xf32>
    %24 = arith.subf %20, %23 : vector<2x8x8xf32>
    %25 = math.exp %24 : vector<2x8x8xf32>
    %cst_14 = arith.constant dense<0.000000e+00> : vector<2x8xf32>
    %26 = vector.multi_reduction <add>, %25, %cst_14 [2] : vector<2x8x8xf32> to vector<2x8xf32>
    %27 = vector.shape_cast %26 : vector<2x8xf32> to vector<2x8x1xf32>
    %28 = tpu.reciprocal %27 {approx = true} : vector<2x8x1xf32> -> vector<2x8x1xf32>
    %29 = vector.broadcast %28 : vector<2x8x1xf32> to vector<2x8x8xf32>
    %30 = arith.mulf %25, %29 : vector<2x8x8xf32>
    "tpu.trace_start"() <{level = 10 : i32, message = "bts,bsv->btv"}> : () -> ()
    %cst_15 = arith.constant dense<0.000000e+00> : vector<2x8x16xf32>
    %31 = tpu.matmul %30, %16, %cst_15 {dimension_numbers = #tpu.dot_dimension_numbers<[2], [1], [1], [2], [0, 0, 0, 1, 1, 2], [0], [0]>} : vector<2x8x8xf32>, vector<2x8x16xf32>, vector<2x8x16xf32> -> vector<2x8x16xf32>
    "tpu.trace_stop"() : () -> ()
    %32 = vector.shape_cast %31 : vector<2x8x16xf32> to vector<16x16xf32>
    %33 = vector.extract_strided_slice %8 {offsets = [0, 0], sizes = [16, 32], strides = [1, 1]} : vector<32x32xf32> to vector<16x32xf32>
    %cst_16 = arith.constant dense<0.000000e+00> : vector<16x32xf32>
    %34 = tpu.matmul %32, %33, %cst_16 {dimension_numbers = #tpu.dot_dimension_numbers<[1], [0], [0], [1], [0, 0, 1, 1], [], []>} : vector<16x16xf32>, vector<16x32xf32>, vector<16x32xf32> -> vector<16x32xf32>
    %35 = arith.addf %13, %34 : vector<16x32xf32>
    %36 = vector.extract_strided_slice %7 {offsets = [0, 16], sizes = [8, 16], strides = [1, 1]} : vector<8x32xf32> to vector<8x16xf32>
    %37 = vector.extract_strided_slice %5 {offsets = [0, 0, 16], sizes = [2, 8, 16], strides = [1, 1, 1]} : vector<2x8x32xf32> to vector<2x8x16xf32>
    %38 = vector.extract_strided_slice %6 {offsets = [0, 0, 16], sizes = [2, 8, 16], strides = [1, 1, 1]} : vector<2x8x32xf32> to vector<2x8x16xf32>
    %39 = vector.shape_cast %36 : vector<8x16xf32> to vector<1x8x16xf32>
    %40 = vector.shape_cast %39 : vector<1x8x16xf32> to vector<1x8x16xf32>
    %41 = vector.broadcast %40 : vector<1x8x16xf32> to vector<2x8x16xf32>
    "tpu.trace_start"() <{level = 10 : i32, message = "btd,bsd->bts"}> : () -> ()
    %cst_17 = arith.constant dense<0.000000e+00> : vector<2x8x8xf32>
    %42 = tpu.matmul %41, %37, %cst_17 {dimension_numbers = #tpu.dot_dimension_numbers<[2], [2], [1], [1], [0, 0, 0, 1, 1, 1], [0], [0]>} : vector<2x8x16xf32>, vector<2x8x16xf32>, vector<2x8x8xf32> -> vector<2x8x8xf32>
    "tpu.trace_stop"() : () -> ()
    %cst_18 = arith.constant dense<0xFF800000> : vector<2x8xf32>
    %43 = vector.multi_reduction <maximumf>, %42, %cst_18 [2] : vector<2x8x8xf32> to vector<2x8xf32>
    %44 = vector.shape_cast %43 : vector<2x8xf32> to vector<2x8x1xf32>
    %45 = vector.broadcast %44 : vector<2x8x1xf32> to vector<2x8x8xf32>
    %46 = arith.subf %42, %45 : vector<2x8x8xf32>
    %47 = math.exp %46 : vector<2x8x8xf32>
    %cst_19 = arith.constant dense<0.000000e+00> : vector<2x8xf32>
    %48 = vector.multi_reduction <add>, %47, %cst_19 [2] : vector<2x8x8xf32> to vector<2x8xf32>
    %49 = vector.shape_cast %48 : vector<2x8xf32> to vector<2x8x1xf32>
    %50 = tpu.reciprocal %49 {approx = true} : vector<2x8x1xf32> -> vector<2x8x1xf32>
    %51 = vector.broadcast %50 : vector<2x8x1xf32> to vector<2x8x8xf32>
    %52 = arith.mulf %47, %51 : vector<2x8x8xf32>
    "tpu.trace_start"() <{level = 10 : i32, message = "bts,bsv->btv"}> : () -> ()
    %cst_20 = arith.constant dense<0.000000e+00> : vector<2x8x16xf32>
    %53 = tpu.matmul %52, %38, %cst_20 {dimension_numbers = #tpu.dot_dimension_numbers<[2], [1], [1], [2], [0, 0, 0, 1, 1, 2], [0], [0]>} : vector<2x8x8xf32>, vector<2x8x16xf32>, vector<2x8x16xf32> -> vector<2x8x16xf32>
    "tpu.trace_stop"() : () -> ()
    %54 = vector.shape_cast %53 : vector<2x8x16xf32> to vector<16x16xf32>
    %55 = vector.extract_strided_slice %8 {offsets = [16, 0], sizes = [16, 32], strides = [1, 1]} : vector<32x32xf32> to vector<16x32xf32>
    %cst_21 = arith.constant dense<0.000000e+00> : vector<16x32xf32>
    %56 = tpu.matmul %54, %55, %cst_21 {dimension_numbers = #tpu.dot_dimension_numbers<[1], [0], [0], [1], [0, 0, 1, 1], [], []>} : vector<16x16xf32>, vector<16x32xf32>, vector<16x32xf32> -> vector<16x32xf32>
    %57 = arith.addf %35, %56 : vector<16x32xf32>
    %c0_22 = arith.constant 0 : index
    %c0_23 = arith.constant 0 : index
    %58 = vector.load %arg7[%c0_22, %c0_23] : memref<5x32xf32, #tpu.memory_space<vmem>>, vector<5x32xf32>
    %59 = vector.extract_strided_slice %58 {offsets = [0, 0], sizes = [1, 32], strides = [1, 1]} : vector<5x32xf32> to vector<1x32xf32>
    %60 = vector.extract_strided_slice %58 {offsets = [1, 0], sizes = [1, 32], strides = [1, 1]} : vector<5x32xf32> to vector<1x32xf32>
    %61 = vector.extract_strided_slice %58 {offsets = [2, 0], sizes = [1, 32], strides = [1, 1]} : vector<5x32xf32> to vector<1x32xf32>
    %62 = vector.extract_strided_slice %58 {offsets = [3, 0], sizes = [1, 32], strides = [1, 1]} : vector<5x32xf32> to vector<1x32xf32>
    %63 = vector.extract_strided_slice %58 {offsets = [4, 0], sizes = [1, 32], strides = [1, 1]} : vector<5x32xf32> to vector<1x32xf32>
    %cst_24 = arith.constant dense<0.000000e+00> : vector<16xf32>
    %64 = vector.multi_reduction <add>, %57, %cst_24 [1] : vector<16x32xf32> to vector<16xf32>
    %65 = vector.shape_cast %64 : vector<16xf32> to vector<16x1xf32>
    %cst_25 = arith.constant 3.200000e+01 : f32
    %66 = vector.broadcast %cst_25 : f32 to vector<16x1xf32>
    %67 = arith.divf %65, %66 : vector<16x1xf32>
    %68 = vector.broadcast %67 : vector<16x1xf32> to vector<16x32xf32>
    %69 = arith.subf %57, %68 : vector<16x32xf32>
    %70 = arith.mulf %69, %69 : vector<16x32xf32>
    %cst_26 = arith.constant dense<0.000000e+00> : vector<16xf32>
    %71 = vector.multi_reduction <add>, %70, %cst_26 [1] : vector<16x32xf32> to vector<16xf32>
    %72 = vector.shape_cast %71 : vector<16xf32> to vector<16x1xf32>
    %cst_27 = arith.constant 3.200000e+01 : f32
    %73 = vector.broadcast %cst_27 : f32 to vector<16x1xf32>
    %74 = arith.divf %72, %73 : vector<16x1xf32>
    %cst_28 = arith.constant 9.99999997E-7 : f32
    %75 = vector.broadcast %cst_28 : f32 to vector<16x1xf32>
    %76 = arith.addf %74, %75 : vector<16x1xf32>
    %77 = math.rsqrt %76 : vector<16x1xf32>
    %78 = vector.broadcast %77 : vector<16x1xf32> to vector<16x32xf32>
    %79 = arith.mulf %69, %78 : vector<16x32xf32>
    %80 = vector.broadcast %59 : vector<1x32xf32> to vector<16x32xf32>
    %81 = arith.mulf %79, %80 : vector<16x32xf32>
    %82 = vector.broadcast %60 : vector<1x32xf32> to vector<16x32xf32>
    %83 = arith.addf %81, %82 : vector<16x32xf32>
    %c0_29 = arith.constant 0 : index
    %c0_30 = arith.constant 0 : index
    %84 = vector.load %arg8[%c0_29, %c0_30] : memref<32x64xf32, #tpu.memory_space<vmem>>, vector<32x64xf32>
    %cst_31 = arith.constant dense<0.000000e+00> : vector<16x64xf32>
    %85 = tpu.matmul %83, %84, %cst_31 {dimension_numbers = #tpu.dot_dimension_numbers<[1], [0], [0], [1], [0, 0, 1, 1], [], []>} : vector<16x32xf32>, vector<32x64xf32>, vector<16x64xf32> -> vector<16x64xf32>
    %c0_32 = arith.constant 0 : index
    %c0_33 = arith.constant 0 : index
    %86 = vector.load %arg9[%c0_32, %c0_33] : memref<1x64xf32, #tpu.memory_space<vmem>>, vector<1x64xf32>
    %87 = vector.broadcast %86 : vector<1x64xf32> to vector<16x64xf32>
    %88 = arith.addf %85, %87 : vector<16x64xf32>
    %cst_34 = arith.constant 0.000000e+00 : f32
    %89 = vector.broadcast %cst_34 : f32 to vector<16x64xf32>
    %90 = arith.maximumf %88, %89 : vector<16x64xf32>
    %c0_35 = arith.constant 0 : index
    %c0_36 = arith.constant 0 : index
    %91 = vector.load %arg10[%c0_35, %c0_36] : memref<64x32xf32, #tpu.memory_space<vmem>>, vector<64x32xf32>
    %cst_37 = arith.constant dense<0.000000e+00> : vector<16x32xf32>
    %92 = tpu.matmul %90, %91, %cst_37 {dimension_numbers = #tpu.dot_dimension_numbers<[1], [0], [0], [1], [0, 0, 1, 1], [], []>} : vector<16x64xf32>, vector<64x32xf32>, vector<16x32xf32> -> vector<16x32xf32>
    %93 = vector.broadcast %61 : vector<1x32xf32> to vector<16x32xf32>
    %94 = arith.addf %92, %93 : vector<16x32xf32>
    %95 = arith.addf %94, %83 : vector<16x32xf32>
    %cst_38 = arith.constant dense<0.000000e+00> : vector<16xf32>
    %96 = vector.multi_reduction <add>, %95, %cst_38 [1] : vector<16x32xf32> to vector<16xf32>
    %97 = vector.shape_cast %96 : vector<16xf32> to vector<16x1xf32>
    %cst_39 = arith.constant 3.200000e+01 : f32
    %98 = vector.broadcast %cst_39 : f32 to vector<16x1xf32>
    %99 = arith.divf %97, %98 : vector<16x1xf32>
    %100 = vector.broadcast %99 : vector<16x1xf32> to vector<16x32xf32>
    %101 = arith.subf %95, %100 : vector<16x32xf32>
    %102 = arith.mulf %101, %101 : vector<16x32xf32>
    %cst_40 = arith.constant dense<0.000000e+00> : vector<16xf32>
    %103 = vector.multi_reduction <add>, %102, %cst_40 [1] : vector<16x32xf32> to vector<16xf32>
    %104 = vector.shape_cast %103 : vector<16xf32> to vector<16x1xf32>
    %cst_41 = arith.constant 3.200000e+01 : f32
    %105 = vector.broadcast %cst_41 : f32 to vector<16x1xf32>
    %106 = arith.divf %104, %105 : vector<16x1xf32>
    %cst_42 = arith.constant 9.99999997E-7 : f32
    %107 = vector.broadcast %cst_42 : f32 to vector<16x1xf32>
    %108 = arith.addf %106, %107 : vector<16x1xf32>
    %109 = math.rsqrt %108 : vector<16x1xf32>
    %110 = vector.broadcast %109 : vector<16x1xf32> to vector<16x32xf32>
    %111 = arith.mulf %101, %110 : vector<16x32xf32>
    %112 = vector.broadcast %62 : vector<1x32xf32> to vector<16x32xf32>
    %113 = arith.mulf %111, %112 : vector<16x32xf32>
    %114 = vector.broadcast %63 : vector<1x32xf32> to vector<16x32xf32>
    %115 = arith.addf %113, %114 : vector<16x32xf32>
    %116 = vector.shape_cast %115 : vector<16x32xf32> to vector<2x8x32xf32>
    %c0_43 = arith.constant 0 : index
    %c0_44 = arith.constant 0 : index
    %c0_45 = arith.constant 0 : index
    %117 = vector.load %arg11[%c0_43, %c0_44, %c0_45] : memref<2x8x32xf32, #tpu.memory_space<vmem>>, vector<2x8x32xf32>
    tpu.vector_store %arg11[%c0_43, %c0_44, %c0_45], %116 {strides = array<i32>} : memref<2x8x32xf32, #tpu.memory_space<vmem>>, vector<2x8x32xf32>,
    return
  }
  func.func @transform_0(%arg0: i32) -> (i32, i32) {
    %c0_i32 = arith.constant 0 : i32
    %c0_i32_0 = arith.constant 0 : i32
    return %arg0, %c0_i32 : i32, i32
  }
  func.func @transform_1(%arg0: i32) -> (i32, i32) {
    %c0_i32 = arith.constant 0 : i32
    %c0_i32_0 = arith.constant 0 : i32
    %c0_i32_1 = arith.constant 0 : i32
    return %c0_i32, %c0_i32_0 : i32, i32
  }
  func.func @transform_2(%arg0: i32) -> (i32, i32) {
    %c0_i32 = arith.constant 0 : i32
    %c0_i32_0 = arith.constant 0 : i32
    %c0_i32_1 = arith.constant 0 : i32
    return %c0_i32, %c0_i32_0 : i32, i32
  }
  func.func @transform_3(%arg0: i32) -> (i32, i32) {
    %c0_i32 = arith.constant 0 : i32
    %c0_i32_0 = arith.constant 0 : i32
    %c0_i32_1 = arith.constant 0 : i32
    return %c0_i32, %c0_i32_0 : i32, i32
  }
  func.func @transform_4(%arg0: i32) -> (i32, i32) {
    %c0_i32 = arith.constant 0 : i32
    %c0_i32_0 = arith.constant 0 : i32
    %c0_i32_1 = arith.constant 0 : i32
    return %c0_i32, %c0_i32_0 : i32, i32
  }
  func.func @transform_5(%arg0: i32) -> (i32, i32) {
    %c0_i32 = arith.constant 0 : i32
    %c0_i32_0 = arith.constant 0 : i32
    %c0_i32_1 = arith.constant 0 : i32
    return %c0_i32, %c0_i32_0 : i32, i32
  }
  func.func @transform_6(%arg0: i32) -> (i32, i32) {
    %c0_i32 = arith.constant 0 : i32
    %c0_i32_0 = arith.constant 0 : i32
    %c0_i32_1 = arith.constant 0 : i32
    return %c0_i32, %c0_i32_0 : i32, i32
  }
  func.func @transform_7(%arg0: i32) -> (i32, i32) {
    %c0_i32 = arith.constant 0 : i32
    %c0_i32_0 = arith.constant 0 : i32
    %c0_i32_1 = arith.constant 0 : i32
    return %c0_i32, %c0_i32_0 : i32, i32
  }
  func.func @transform_8(%arg0: i32) -> (i32, i32) {
    %c0_i32 = arith.constant 0 : i32
    %c0_i32_0 = arith.constant 0 : i32
    %c0_i32_1 = arith.constant 0 : i32
    return %c0_i32, %c0_i32_0 : i32, i32
  }
  func.func @transform_9(%arg0: i32) -> (i32, i32) {
    %c0_i32 = arith.constant 0 : i32
    %c0_i32_0 = arith.constant 0 : i32
    %c0_i32_1 = arith.constant 0 : i32
    return %c0_i32, %c0_i32_0 : i32, i32
  }
  func.func @transform_10(%arg0: i32) -> (i32, i32, i32) {
    %c0_i32 = arith.constant 0 : i32
    %c0_i32_0 = arith.constant 0 : i32
    %c0_i32_1 = arith.constant 0 : i32
    return %arg0, %c0_i32, %c0_i32_0 : i32, i32, i32
  }
}

</mosaic_0001>

<llo_original>
// kernel: tpu_custom_call.1
$region0: #{tpu_custom_call.1}
  #allocation0 [shape = 'u32[]', space=smem, size = 0x4, offset = 0x4, fixed_abs, tag = 'smem constant byte address 0x4 - core index']
  #allocation1 [shape = 'u32[144,128]{1,0:T(1,128)}', space=vmem, size = 0x12000, scoped, tag = 'internal scratch']
  %s0 = inlined_call_operand.hbm [shape: f32[16,32], index: 0, kind: input, shape index: {}]
  %s1 = inlined_call_operand.hbm [shape: f32[8,32], index: 1, kind: input, shape index: {}]
  %s2 = inlined_call_operand.hbm [shape: f32[8,32], index: 2, kind: input, shape index: {}]
  %s3 = inlined_call_operand.vmem [shape: f32[32,32], index: 3, kind: input, shape index: {}]
  %s4 = inlined_call_operand.vmem [shape: f32[32,32], index: 4, kind: input, shape index: {}]
  %s5 = inlined_call_operand.vmem [shape: f32[32,32], index: 5, kind: input, shape index: {}]
  %s6 = inlined_call_operand.vmem [shape: f32[5,32], index: 6, kind: input, shape index: {}]
  %s7 = inlined_call_operand.hbm [shape: f32[32,64], index: 7, kind: input, shape index: {}]
  %s8 = inlined_call_operand.vmem [shape: f32[1,64], index: 8, kind: input, shape index: {}]
  %s9 = inlined_call_operand.vmem [shape: f32[64,32], index: 9, kind: input, shape index: {}]
  %s10 = inlined_call_operand.hbm [shape: f32[2,8,32], index: 10, kind: output, shape index: {}]
  %s11 = sld [smem:[#allocation0]]
  $region66: #{tpu_custom_call.1} parent=0
    _
  %s13 = ssub.s32 1, %s11
  %s14 = scalar_select 0, %s13, %s11
  $region1: #{tpu_custom_call.1} parent=0
    #allocation2 [shape = 'u8[8192]{0}', space=vmem, size = 0x2000, scoped, tag = 'input window, operand 0, single buffered']
    #allocation3 [shape = 's32[1]{0}', space=sflag, size = 0x4, scoped, tag = 'scoped memory for tpu_custom_call.1']
    #allocation4 [shape = 's32[1]{0}', space=sflag, size = 0x4, scoped, tag = 'scoped memory for tpu_custom_call.1']
    #allocation5 [shape = 'u8[4096]{0}', space=vmem, size = 0x1000, scoped, tag = 'input window, operand 1, single buffered']
    #allocation6 [shape = 's32[1]{0}', space=sflag, size = 0x4, scoped, tag = 'scoped memory for tpu_custom_call.1']
    #allocation7 [shape = 'u8[4096]{0}', space=vmem, size = 0x1000, scoped, tag = 'input window, operand 2, single buffered']
    #allocation8 [shape = 'u8[16384]{0}', space=vmem, size = 0x4000, scoped, tag = 'input window, operand 7, single buffered']
    #allocation9 [shape = 's32[1]{0}', space=sflag, size = 0x4, scoped, tag = 'scoped memory for tpu_custom_call.1']
    #allocation10 [shape = 'u8[8192]{0}', space=vmem, size = 0x2000, scoped, tag = 'output window, operand 0, single buffered']
    %15 = vsyncpa [#allocation3], 0
    %16 = vsyncpa [#allocation6], 0
    %17 = vsyncpa [#allocation9], 0
    %18 = vsyncpa [#allocation4], 0
    // Predicated region
    $region2: #{tpu_custom_call.1} parent=1 // pred_check
      _
    $region3: #{tpu_custom_call.1} parent=1 // pred_check_branch
      %20 = sbr.rel (0) target = $region5
    $region4: #{tpu_custom_call.1} parent=1 // pred_region
      %s22 = ssub.s32 256, 256
      %23 = vsyncadd [#allocation3], %s22
      %s24 = sshll.u32 [#allocation2], 4
      %s25 = int_to_ptr.vmem [resolvable:$true] %s24
      %30 = dma.hbm_to_vmem [thread:$0]  %s0, 256, %s25, [#allocation3], 128, 128, 8
    $region5: #{tpu_custom_call.1} parent=1 // pred_fallthru
      _
    // Predicated region
    $region6: #{tpu_custom_call.1} parent=1 // pred_check
      _
    $region7: #{tpu_custom_call.1} parent=1 // pred_check_branch
      %32 = sbr.rel (0) target = $region9
    $region8: #{tpu_custom_call.1} parent=1 // pred_region
      %s34 = ssub.s32 128, 128
      %35 = vsyncadd [#allocation6], %s34
      %s37 = sshll.u32 [#allocation5], 4
      %s38 = int_to_ptr.vmem [resolvable:$true] %s37
      %40 = dma.hbm_to_vmem [thread:$0]  %s1, 128, %s38, [#allocation6]
    $region9: #{tpu_custom_call.1} parent=1 // pred_fallthru
      _
    // Predicated region
    $region10: #{tpu_custom_call.1} parent=1 // pred_check
      _
    $region11: #{tpu_custom_call.1} parent=1 // pred_check_branch
      %42 = sbr.rel (0) target = $region13
    $region12: #{tpu_custom_call.1} parent=1 // pred_region
      %s44 = ssub.s32 128, 128
      %45 = vsyncadd [#allocation6], %s44
      %s47 = sshll.u32 [#allocation7], 4
      %s48 = int_to_ptr.vmem [resolvable:$true] %s47
      %50 = dma.hbm_to_vmem [thread:$0]  %s2, 128, %s48, [#allocation6]
    $region13: #{tpu_custom_call.1} parent=1 // pred_fallthru
      _
    // Predicated region
    $region14: #{tpu_custom_call.1} parent=1 // pred_check
      _
    $region15: #{tpu_custom_call.1} parent=1 // pred_check_branch
      %52 = sbr.rel (0) target = $region17
    $region16: #{tpu_custom_call.1} parent=1 // pred_region
      _
    $region17: #{tpu_custom_call.1} parent=1 // pred_fallthru
      _
    // Predicated region
    $region18: #{tpu_custom_call.1} parent=1 // pred_check
      _
    $region19: #{tpu_custom_call.1} parent=1 // pred_check_branch
      %54 = sbr.rel (0) target = $region21
    $region20: #{tpu_custom_call.1} parent=1 // pred_region
      _
    $region21: #{tpu_custom_call.1} parent=1 // pred_fallthru
      _
    // Predicated region
    $region22: #{tpu_custom_call.1} parent=1 // pred_check
      _
    $region23: #{tpu_custom_call.1} parent=1 // pred_check_branch
      %56 = sbr.rel (0) target = $region25
    $region24: #{tpu_custom_call.1} parent=1 // pred_region
      _
    $region25: #{tpu_custom_call.1} parent=1 // pred_fallthru
      _
    // Predicated region
    $region26: #{tpu_custom_call.1} parent=1 // pred_check
      _
    $region27: #{tpu_custom_call.1} parent=1 // pred_check_branch
      %58 = sbr.rel (0) target = $region29
    $region28: #{tpu_custom_call.1} parent=1 // pred_region
      _
    $region29: #{tpu_custom_call.1} parent=1 // pred_fallthru
      _
    // Predicated region
    $region30: #{tpu_custom_call.1} parent=1 // pred_check
      _
    $region31: #{tpu_custom_call.1} parent=1 // pred_check_branch
      %60 = sbr.rel (0) target = $region33
    $region32: #{tpu_custom_call.1} parent=1 // pred_region
      %s62 = ssub.s32 512, 512
      %63 = vsyncadd [#allocation9], %s62
      %s64 = sshll.u32 [#allocation8], 4
      %s65 = int_to_ptr.vmem [resolvable:$true] %s64
      %70 = dma.hbm_to_vmem [thread:$0]  %s7, 512, %s65, [#allocation9], 128, 128, 8
    $region33: #{tpu_custom_call.1} parent=1 // pred_fallthru
      _
    // Predicated region
    $region34: #{tpu_custom_call.1} parent=1 // pred_check
      _
    $region35: #{tpu_custom_call.1} parent=1 // pred_check_branch
      %72 = sbr.rel (0) target = $region37
    $region36: #{tpu_custom_call.1} parent=1 // pred_region
      _
    $region37: #{tpu_custom_call.1} parent=1 // pred_fallthru
      _
    // Predicated region
    $region38: #{tpu_custom_call.1} parent=1 // pred_check
      _
    $region39: #{tpu_custom_call.1} parent=1 // pred_check_branch
      %74 = sbr.rel (0) target = $region41
    $region40: #{tpu_custom_call.1} parent=1 // pred_region
      _
    $region41: #{tpu_custom_call.1} parent=1 // pred_fallthru
      _
    // Predicated region
    $region42: #{tpu_custom_call.1} parent=1 // pred_check
      _
    $region43: #{tpu_custom_call.1} parent=1 // pred_check_branch
      %76 = sbr.rel (0) target = $region45
    $region44: #{tpu_custom_call.1} parent=1 // pred_region
      %77 = dma.done [#allocation3], 256
    $region45: #{tpu_custom_call.1} parent=1 // pred_fallthru
      _
    // Predicated region
    $region46: #{tpu_custom_call.1} parent=1 // pred_check
      _
    $region47: #{tpu_custom_call.1} parent=1 // pred_check_branch
      %79 = sbr.rel (0) target = $region49
    $region48: #{tpu_custom_call.1} parent=1 // pred_region
      %80 = dma.done [#allocation6], 128
    $region49: #{tpu_custom_call.1} parent=1 // pred_fallthru
      _
    // Predicated region
    $region50: #{tpu_custom_call.1} parent=1 // pred_check
      _
    $region51: #{tpu_custom_call.1} parent=1 // pred_check_branch
      %82 = sbr.rel (0) target = $region53
    $region52: #{tpu_custom_call.1} parent=1 // pred_region
      %83 = dma.done [#allocation6], 128
    $region53: #{tpu_custom_call.1} parent=1 // pred_fallthru
      _
    // Predicated region
    $region54: #{tpu_custom_call.1} parent=1 // pred_check
      _
    $region55: #{tpu_custom_call.1} parent=1 // pred_check_branch
      %85 = sbr.rel (0) target = $region57
    $region56: #{tpu_custom_call.1} parent=1 // pred_region
      %86 = dma.done [#allocation9], 512
    $region57: #{tpu_custom_call.1} parent=1 // pred_fallthru
      _
    %v87 = vld [vmem:[#allocation2] sm:$0xff]
    %v88 = vld [vmem:[#allocation2 + $0x8] sm:$0xff]
    %v89 = vld [vmem:[%s3] sm:$0xff]
    %v90 = vld [vmem:[%s3 + $0x8] sm:$0xff]
    %v91 = vld [vmem:[%s3 + $0x10] sm:$0xff]
    %v92 = vld [vmem:[%s3 + $0x18] sm:$0xff]
    %vm93 = vcmask 261120
    %v95 = vsel %vm93, %v87, 0
    %v98 = vsel %vm93, %v88, 0
    %100 = vmatprep.subr.mxu0 0.0
    %101 = vmatpush1.msra.mxu0 0.0
    %102 = vmatprep.subr.mxu0 0.0
    %103 = vmatpush1.msra.mxu0 0.0
    %104 = vmatprep.subr.mxu0 0.0
    %105 = vmatpush1.msra.mxu0 0.0
    %106 = vmatprep.subr.mxu0 0.0
    %107 = vmatpush1.msra.mxu0 0.0
    %108 = vmatprep.subr.mxu0 0.0
    %109 = vmatpush1.msra.mxu0 0.0
    %110 = vmatprep.subr.mxu0 0.0
    %111 = vmatpush1.msra.mxu0 0.0
    %112 = vmatprep.subr.mxu0 0.0
    %113 = vmatpush1.msra.mxu0 0.0
    %114 = vmatprep.subr.mxu0 0.0
    %115 = vmatpush1.msra.mxu0 0.0
    %116 = vmatprep.subr.mxu0 0.0
    %117 = vmatpush1.msra.mxu0 0.0
    %118 = vmatprep.subr.mxu0 0.0
    %119 = vmatpush1.msra.mxu0 0.0
    %120 = vmatprep.subr.mxu0 0.0
    %121 = vmatpush1.msra.mxu0 0.0
    %122 = vmatprep.subr.mxu0 0.0
    %123 = vmatpush1.msra.mxu0 0.0
    %124 = vmatprep.subr.mxu0 0.0
    %125 = vmatpush1.msra.mxu0 %v92
    %126 = vmatprep.subr.mxu0 0.0
    %127 = vmatpush1.msra.mxu0 %v91
    %128 = vmatprep.subr.mxu0 0.0
    %129 = vmatpush1.msra.mxu0 %v90
    %130 = vmatprep.subr.mxu0 0.0
    %131 = vmatpush1.msra.mxu0 %v89
    %132 = vmatprep.subr.mxu0 0.0
    %133 = vmatpush2.msra.mxu0 0.0
    %134 = vmatprep.subr.mxu0 0.0
    %135 = vmatpush2.msra.mxu0 0.0
    %136 = vmatprep.subr.mxu0 0.0
    %137 = vmatpush2.msra.mxu0 0.0
    %138 = vmatprep.subr.mxu0 0.0
    %139 = vmatpush2.msra.mxu0 0.0
    %140 = vmatprep.subr.mxu0 0.0
    %141 = vmatpush2.msra.mxu0 0.0
    %142 = vmatprep.subr.mxu0 0.0
    %143 = vmatpush2.msra.mxu0 0.0
    %144 = vmatprep.subr.mxu0 0.0
    %145 = vmatpush2.msra.mxu0 0.0
    %146 = vmatprep.subr.mxu0 0.0
    %147 = vmatpush2.msra.mxu0 0.0
    %148 = vmatprep.subr.mxu0 0.0
    %149 = vmatpush2.msra.mxu0 0.0
    %150 = vmatprep.subr.mxu0 0.0
    %151 = vmatpush2.msra.mxu0 0.0
    %152 = vmatprep.subr.mxu0 0.0
    %153 = vmatpush2.msra.mxu0 0.0
    %154 = vmatprep.subr.mxu0 0.0
    %155 = vmatpush2.msra.mxu0 0.0
    %156 = vmatprep.subr.mxu0 0.0
    %157 = vmatpush2.msra.mxu0 0.0
    %158 = vmatprep.subr.mxu0 0.0
    %159 = vmatpush2.msra.mxu0 0.0
    %160 = vmatprep.subr.mxu0 0.0
    %161 = vmatpush2.msra.mxu0 0.0
    %162 = vmatprep.subr.mxu0 0.0
    %163 = vmatpush2.msra.mxu0 0.0
    %164 = vmatprep.mubr.f32.mxu0 0.0
    %165 = vmatmul.mubr.f32.gmra.mxu0 %v95
    %v166 = vpop.f32.mrf.mxu0
    %v167 = vadd.f32 0.0, %v166
    %v168 = vpop.f32.mrf.mxu0
    %169 = vmatprep.mubr.f32.mxu0 0.0
    %170 = vmatmul.mubr.f32.gmra.mxu0 %v98
    %v171 = vpop.f32.mrf.mxu0
    %v172 = vadd.f32 0.0, %v171
    %v173 = vpop.f32.mrf.mxu0
    %174 = vdwg.mxu0
    %v175 = vld [vmem:[%s4] sm:$0xff]
    %v176 = vld [vmem:[%s4 + $0x8] sm:$0xff]
    %v177 = vld [vmem:[%s4 + $0x10] sm:$0xff]
    %v178 = vld [vmem:[%s4 + $0x18] sm:$0xff]
    %179 = vmatprep.subr.mxu0 0.0
    %180 = vmatpush1.msra.mxu0 0.0
    %181 = vmatprep.subr.mxu0 0.0
    %182 = vmatpush1.msra.mxu0 0.0
    %183 = vmatprep.subr.mxu0 0.0
    %184 = vmatpush1.msra.mxu0 0.0
    %185 = vmatprep.subr.mxu0 0.0
    %186 = vmatpush1.msra.mxu0 0.0
    %187 = vmatprep.subr.mxu0 0.0
    %188 = vmatpush1.msra.mxu0 0.0
    %189 = vmatprep.subr.mxu0 0.0
    %190 = vmatpush1.msra.mxu0 0.0
    %191 = vmatprep.subr.mxu0 0.0
    %192 = vmatpush1.msra.mxu0 0.0
    %193 = vmatprep.subr.mxu0 0.0
    %194 = vmatpush1.msra.mxu0 0.0
    %195 = vmatprep.subr.mxu0 0.0
    %196 = vmatpush1.msra.mxu0 0.0
    %197 = vmatprep.subr.mxu0 0.0
    %198 = vmatpush1.msra.mxu0 0.0
    %199 = vmatprep.subr.mxu0 0.0
    %200 = vmatpush1.msra.mxu0 0.0
    %201 = vmatprep.subr.mxu0 0.0
    %202 = vmatpush1.msra.mxu0 0.0
    %203 = vmatprep.subr.mxu0 0.0
    %204 = vmatpush1.msra.mxu0 %v178
    %205 = vmatprep.subr.mxu0 0.0
    %206 = vmatpush1.msra.mxu0 %v177
    %207 = vmatprep.subr.mxu0 0.0
    %208 = vmatpush1.msra.mxu0 %v176
    %209 = vmatprep.subr.mxu0 0.0
    %210 = vmatpush1.msra.mxu0 %v175
    %211 = vmatprep.subr.mxu0 0.0
    %212 = vmatpush2.msra.mxu0 0.0
    %213 = vmatprep.subr.mxu0 0.0
    %214 = vmatpush2.msra.mxu0 0.0
    %215 = vmatprep.subr.mxu0 0.0
    %216 = vmatpush2.msra.mxu0 0.0
    %217 = vmatprep.subr.mxu0 0.0
    %218 = vmatpush2.msra.mxu0 0.0
    %219 = vmatprep.subr.mxu0 0.0
    %220 = vmatpush2.msra.mxu0 0.0
    %221 = vmatprep.subr.mxu0 0.0
    %222 = vmatpush2.msra.mxu0 0.0
    %223 = vmatprep.subr.mxu0 0.0
    %224 = vmatpush2.msra.mxu0 0.0
    %225 = vmatprep.subr.mxu0 0.0
    %226 = vmatpush2.msra.mxu0 0.0
    %227 = vmatprep.subr.mxu0 0.0
    %228 = vmatpush2.msra.mxu0 0.0
    %229 = vmatprep.subr.mxu0 0.0
    %230 = vmatpush2.msra.mxu0 0.0
    %231 = vmatprep.subr.mxu0 0.0
    %232 = vmatpush2.msra.mxu0 0.0
    %233 = vmatprep.subr.mxu0 0.0
    %234 = vmatpush2.msra.mxu0 0.0
    %235 = vmatprep.subr.mxu0 0.0
    %236 = vmatpush2.msra.mxu0 0.0
    %237 = vmatprep.subr.mxu0 0.0
    %238 = vmatpush2.msra.mxu0 0.0
    %239 = vmatprep.subr.mxu0 0.0
    %240 = vmatpush2.msra.mxu0 0.0
    %241 = vmatprep.subr.mxu0 0.0
    %242 = vmatpush2.msra.mxu0 0.0
    %243 = vmatprep.mubr.f32.mxu0 0.0
    %244 = vmatmul.mubr.f32.gmra.mxu0 %v95
    %v245 = vpop.f32.mrf.mxu0
    %v246 = vadd.f32 0.0, %v245
    %v247 = vpop.f32.mrf.mxu0
    %248 = vmatprep.mubr.f32.mxu0 0.0
    %249 = vmatmul.mubr.f32.gmra.mxu0 %v98
    %v250 = vpop.f32.mrf.mxu0
    %v251 = vadd.f32 0.0, %v250
    %v252 = vpop.f32.mrf.mxu0
    %253 = vdwg.mxu0
    %v254 = vld [vmem:[#allocation5] sm:$0xff]
    %v255 = vld [vmem:[%s5] sm:$0xff]
    %v256 = vld [vmem:[%s5 + $0x8] sm:$0xff]
    %v257 = vld [vmem:[%s5 + $0x10] sm:$0xff]
    %v258 = vld [vmem:[%s5 + $0x18] sm:$0xff]
    %v259 = vld [vmem:[#allocation7] sm:$0xff]
    %vm260 = vcmask 130048
    %v262 = vsel %vm260, %v254, 0
    %v265 = vsel %vm260, %v167, 0
    %267 = vmatprep.subr.mxu0 0.0
    %268 = vmatpush1.xpose.msra.mxu0 0.0
    %269 = vmatprep.subr.mxu0 0.0
    %270 = vmatpush1.xpose.msra.mxu0 0.0
    %271 = vmatprep.subr.mxu0 0.0
    %272 = vmatpush1.xpose.msra.mxu0 0.0
    %273 = vmatprep.subr.mxu0 0.0
    %274 = vmatpush1.xpose.msra.mxu0 0.0
    %275 = vmatprep.subr.mxu0 0.0
    %276 = vmatpush1.xpose.msra.mxu0 0.0
    %277 = vmatprep.subr.mxu0 0.0
    %278 = vmatpush1.xpose.msra.mxu0 0.0
    %279 = vmatprep.subr.mxu0 0.0
    %280 = vmatpush1.xpose.msra.mxu0 0.0
    %281 = vmatprep.subr.mxu0 0.0
    %282 = vmatpush1.xpose.msra.mxu0 0.0
    %283 = vmatprep.subr.mxu0 0.0
    %284 = vmatpush1.xpose.msra.mxu0 0.0
    %285 = vmatprep.subr.mxu0 0.0
    %286 = vmatpush1.xpose.msra.mxu0 0.0
    %287 = vmatprep.subr.mxu0 0.0
    %288 = vmatpush1.xpose.msra.mxu0 0.0
    %289 = vmatprep.subr.mxu0 0.0
    %290 = vmatpush1.xpose.msra.mxu0 0.0
    %291 = vmatprep.subr.mxu0 0.0
    %292 = vmatpush1.xpose.msra.mxu0 0.0
    %293 = vmatprep.subr.mxu0 0.0
    %294 = vmatpush1.xpose.msra.mxu0 0.0
    %295 = vmatprep.subr.mxu0 0.0
    %296 = vmatpush1.xpose.msra.mxu0 0.0
    %297 = vmatprep.subr.mxu0 0.0
    %298 = vmatpush1.xpose.msra.mxu0 %v265
    %299 = vmatprep.subr.mxu0 0.0
    %300 = vmatpush2.xpose.msra.mxu0 0.0
    %301 = vmatprep.subr.mxu0 0.0
    %302 = vmatpush2.xpose.msra.mxu0 0.0
    %303 = vmatprep.subr.mxu0 0.0
    %304 = vmatpush2.xpose.msra.mxu0 0.0
    %305 = vmatprep.subr.mxu0 0.0
    %306 = vmatpush2.xpose.msra.mxu0 0.0
    %307 = vmatprep.subr.mxu0 0.0
    %308 = vmatpush2.xpose.msra.mxu0 0.0
    %309 = vmatprep.subr.mxu0 0.0
    %310 = vmatpush2.xpose.msra.mxu0 0.0
    %311 = vmatprep.subr.mxu0 0.0
    %312 = vmatpush2.xpose.msra.mxu0 0.0
    %313 = vmatprep.subr.mxu0 0.0
    %314 = vmatpush2.xpose.msra.mxu0 0.0
    %315 = vmatprep.subr.mxu0 0.0
    %316 = vmatpush2.xpose.msra.mxu0 0.0
    %317 = vmatprep.subr.mxu0 0.0
    %318 = vmatpush2.xpose.msra.mxu0 0.0
    %319 = vmatprep.subr.mxu0 0.0
    %320 = vmatpush2.xpose.msra.mxu0 0.0
    %321 = vmatprep.subr.mxu0 0.0
    %322 = vmatpush2.xpose.msra.mxu0 0.0
    %323 = vmatprep.subr.mxu0 0.0
    %324 = vmatpush2.xpose.msra.mxu0 0.0
    %325 = vmatprep.subr.mxu0 0.0
    %326 = vmatpush2.xpose.msra.mxu0 0.0
    %327 = vmatprep.subr.mxu0 0.0
    %328 = vmatpush2.xpose.msra.mxu0 0.0
    %329 = vmatprep.subr.mxu0 0.0
    %330 = vmatpush2.xpose.msra.mxu0 0.0
    %331 = vmatprep.mubr.f32.mxu0 0.0
    %332 = vmatmul.mubr.f32.gmra.mxu0 %v262
    %v333 = vpop.f32.mrf.mxu0
    %v334 = vadd.f32 0.0, %v333
    %v335 = vpop.f32.mrf.mxu0
    %336 = vdwg.mxu0
    %v338 = vsel %vm260, %v172, 0
    %340 = vmatprep.subr.mxu0 0.0
    %341 = vmatpush1.xpose.msra.mxu0 0.0
    %342 = vmatprep.subr.mxu0 0.0
    %343 = vmatpush1.xpose.msra.mxu0 0.0
    %344 = vmatprep.subr.mxu0 0.0
    %345 = vmatpush1.xpose.msra.mxu0 0.0
    %346 = vmatprep.subr.mxu0 0.0
    %347 = vmatpush1.xpose.msra.mxu0 0.0
    %348 = vmatprep.subr.mxu0 0.0
    %349 = vmatpush1.xpose.msra.mxu0 0.0
    %350 = vmatprep.subr.mxu0 0.0
    %351 = vmatpush1.xpose.msra.mxu0 0.0
    %352 = vmatprep.subr.mxu0 0.0
    %353 = vmatpush1.xpose.msra.mxu0 0.0
    %354 = vmatprep.subr.mxu0 0.0
    %355 = vmatpush1.xpose.msra.mxu0 0.0
    %356 = vmatprep.subr.mxu0 0.0
    %357 = vmatpush1.xpose.msra.mxu0 0.0
    %358 = vmatprep.subr.mxu0 0.0
    %359 = vmatpush1.xpose.msra.mxu0 0.0
    %360 = vmatprep.subr.mxu0 0.0
    %361 = vmatpush1.xpose.msra.mxu0 0.0
    %362 = vmatprep.subr.mxu0 0.0
    %363 = vmatpush1.xpose.msra.mxu0 0.0
    %364 = vmatprep.subr.mxu0 0.0
    %365 = vmatpush1.xpose.msra.mxu0 0.0
    %366 = vmatprep.subr.mxu0 0.0
    %367 = vmatpush1.xpose.msra.mxu0 0.0
    %368 = vmatprep.subr.mxu0 0.0
    %369 = vmatpush1.xpose.msra.mxu0 0.0
    %370 = vmatprep.subr.mxu0 0.0
    %371 = vmatpush1.xpose.msra.mxu0 %v338
    %372 = vmatprep.subr.mxu0 0.0
    %373 = vmatpush2.xpose.msra.mxu0 0.0
    %374 = vmatprep.subr.mxu0 0.0
    %375 = vmatpush2.xpose.msra.mxu0 0.0
    %376 = vmatprep.subr.mxu0 0.0
    %377 = vmatpush2.xpose.msra.mxu0 0.0
    %378 = vmatprep.subr.mxu0 0.0
    %379 = vmatpush2.xpose.msra.mxu0 0.0
    %380 = vmatprep.subr.mxu0 0.0
    %381 = vmatpush2.xpose.msra.mxu0 0.0
    %382 = vmatprep.subr.mxu0 0.0
    %383 = vmatpush2.xpose.msra.mxu0 0.0
    %384 = vmatprep.subr.mxu0 0.0
    %385 = vmatpush2.xpose.msra.mxu0 0.0
    %386 = vmatprep.subr.mxu0 0.0
    %387 = vmatpush2.xpose.msra.mxu0 0.0
    %388 = vmatprep.subr.mxu0 0.0
    %389 = vmatpush2.xpose.msra.mxu0 0.0
    %390 = vmatprep.subr.mxu0 0.0
    %391 = vmatpush2.xpose.msra.mxu0 0.0
    %392 = vmatprep.subr.mxu0 0.0
    %393 = vmatpush2.xpose.msra.mxu0 0.0
    %394 = vmatprep.subr.mxu0 0.0
    %395 = vmatpush2.xpose.msra.mxu0 0.0
    %396 = vmatprep.subr.mxu0 0.0
    %397 = vmatpush2.xpose.msra.mxu0 0.0
    %398 = vmatprep.subr.mxu0 0.0
    %399 = vmatpush2.xpose.msra.mxu0 0.0
    %400 = vmatprep.subr.mxu0 0.0
    %401 = vmatpush2.xpose.msra.mxu0 0.0
    %402 = vmatprep.subr.mxu0 0.0
    %403 = vmatpush2.xpose.msra.mxu0 0.0
    %404 = vmatprep.mubr.f32.mxu0 0.0
    %405 = vmatmul.mubr.f32.gmra.mxu0 %v262
    %v406 = vpop.f32.mrf.mxu0
    %v407 = vadd.f32 0.0, %v406
    %v408 = vpop.f32.mrf.mxu0
    %409 = vdwg.mxu0
    %vm410 = vcmask 64512
    %v411 = vsel %vm410, %v334, -inf
    %412 = vmax.xlane.f32.xlu0 %v411
    %v413 = vpop.xlane.xlu0 %412
    %v414 = vsel %vm410, %v407, -inf
    %415 = vmax.xlane.f32.xlu0 %v414
    %v416 = vpop.xlane.xlu0 %415
    %v417 = vsub.f32 %v334, %v413
    %v418 = vsub.f32 %v407, %v416
    %v419 = vmul.f32 %v417, 1.442695
    %v420 = vpow.pop %v419
    %v421 = vmul.f32 %v418, 1.442695
    %v422 = vpow.pop %v421
    %v423 = vsel %vm410, %v420, 0.0
    %424 = vadd.xlane.f32.xlu0 %v423
    %v425 = vpop.xlane.xlu0 %424
    %v426 = vsel %vm410, %v422, 0.0
    %427 = vadd.xlane.f32.xlu0 %v426
    %v428 = vpop.xlane.xlu0 %427
    %v429 = vrcp.pop %v425
    %v430 = vrcp.pop %v428
    %v431 = vmul.f32 %v420, %v429
    %v432 = vmul.f32 %v422, %v430
    %v434 = vsel %vm410, %v431, 0
    %436 = vmatprep.subr.mxu0 0.0
    %437 = vmatpush1.msra.mxu0 0.0
    %438 = vmatprep.subr.mxu0 0.0
    %439 = vmatpush1.msra.mxu0 0.0
    %440 = vmatprep.subr.mxu0 0.0
    %441 = vmatpush1.msra.mxu0 0.0
    %442 = vmatprep.subr.mxu0 0.0
    %443 = vmatpush1.msra.mxu0 0.0
    %444 = vmatprep.subr.mxu0 0.0
    %445 = vmatpush1.msra.mxu0 0.0
    %446 = vmatprep.subr.mxu0 0.0
    %447 = vmatpush1.msra.mxu0 0.0
    %448 = vmatprep.subr.mxu0 0.0
    %449 = vmatpush1.msra.mxu0 0.0
    %450 = vmatprep.subr.mxu0 0.0
    %451 = vmatpush1.msra.mxu0 0.0
    %452 = vmatprep.subr.mxu0 0.0
    %453 = vmatpush1.msra.mxu0 0.0
    %454 = vmatprep.subr.mxu0 0.0
    %455 = vmatpush1.msra.mxu0 0.0
    %456 = vmatprep.subr.mxu0 0.0
    %457 = vmatpush1.msra.mxu0 0.0
    %458 = vmatprep.subr.mxu0 0.0
    %459 = vmatpush1.msra.mxu0 0.0
    %460 = vmatprep.subr.mxu0 0.0
    %461 = vmatpush1.msra.mxu0 0.0
    %462 = vmatprep.subr.mxu0 0.0
    %463 = vmatpush1.msra.mxu0 0.0
    %464 = vmatprep.subr.mxu0 0.0
    %465 = vmatpush1.msra.mxu0 0.0
    %466 = vmatprep.subr.mxu0 0.0
    %467 = vmatpush1.msra.mxu0 %v246
    %468 = vmatprep.subr.mxu0 0.0
    %469 = vmatpush2.msra.mxu0 0.0
    %470 = vmatprep.subr.mxu0 0.0
    %471 = vmatpush2.msra.mxu0 0.0
    %472 = vmatprep.subr.mxu0 0.0
    %473 = vmatpush2.msra.mxu0 0.0
    %474 = vmatprep.subr.mxu0 0.0
    %475 = vmatpush2.msra.mxu0 0.0
    %476 = vmatprep.subr.mxu0 0.0
    %477 = vmatpush2.msra.mxu0 0.0
    %478 = vmatprep.subr.mxu0 0.0
    %479 = vmatpush2.msra.mxu0 0.0
    %480 = vmatprep.subr.mxu0 0.0
    %481 = vmatpush2.msra.mxu0 0.0
    %482 = vmatprep.subr.mxu0 0.0
    %483 = vmatpush2.msra.mxu0 0.0
    %484 = vmatprep.subr.mxu0 0.0
    %485 = vmatpush2.msra.mxu0 0.0
    %486 = vmatprep.subr.mxu0 0.0
    %487 = vmatpush2.msra.mxu0 0.0
    %488 = vmatprep.subr.mxu0 0.0
    %489 = vmatpush2.msra.mxu0 0.0
    %490 = vmatprep.subr.mxu0 0.0
    %491 = vmatpush2.msra.mxu0 0.0
    %492 = vmatprep.subr.mxu0 0.0
    %493 = vmatpush2.msra.mxu0 0.0
    %494 = vmatprep.subr.mxu0 0.0
    %495 = vmatpush2.msra.mxu0 0.0
    %496 = vmatprep.subr.mxu0 0.0
    %497 = vmatpush2.msra.mxu0 0.0
    %498 = vmatprep.subr.mxu0 0.0
    %499 = vmatpush2.msra.mxu0 0.0
    %500 = vmatprep.mubr.f32.mxu0 0.0
    %501 = vmatmul.mubr.f32.gmra.mxu0 %v434
    %v502 = vpop.f32.mrf.mxu0
    %v503 = vadd.f32 0.0, %v502
    %v504 = vpop.f32.mrf.mxu0
    %505 = vdwg.mxu0
    %v507 = vsel %vm410, %v432, 0
    %509 = vmatprep.subr.mxu0 0.0
    %510 = vmatpush1.msra.mxu0 0.0
    %511 = vmatprep.subr.mxu0 0.0
    %512 = vmatpush1.msra.mxu0 0.0
    %513 = vmatprep.subr.mxu0 0.0
    %514 = vmatpush1.msra.mxu0 0.0
    %515 = vmatprep.subr.mxu0 0.0
    %516 = vmatpush1.msra.mxu0 0.0
    %517 = vmatprep.subr.mxu0 0.0
    %518 = vmatpush1.msra.mxu0 0.0
    %519 = vmatprep.subr.mxu0 0.0
    %520 = vmatpush1.msra.mxu0 0.0
    %521 = vmatprep.subr.mxu0 0.0
    %522 = vmatpush1.msra.mxu0 0.0
    %523 = vmatprep.subr.mxu0 0.0
    %524 = vmatpush1.msra.mxu0 0.0
    %525 = vmatprep.subr.mxu0 0.0
    %526 = vmatpush1.msra.mxu0 0.0
    %527 = vmatprep.subr.mxu0 0.0
    %528 = vmatpush1.msra.mxu0 0.0
    %529 = vmatprep.subr.mxu0 0.0
    %530 = vmatpush1.msra.mxu0 0.0
    %531 = vmatprep.subr.mxu0 0.0
    %532 = vmatpush1.msra.mxu0 0.0
    %533 = vmatprep.subr.mxu0 0.0
    %534 = vmatpush1.msra.mxu0 0.0
    %535 = vmatprep.subr.mxu0 0.0
    %536 = vmatpush1.msra.mxu0 0.0
    %537 = vmatprep.subr.mxu0 0.0
    %538 = vmatpush1.msra.mxu0 0.0
    %539 = vmatprep.subr.mxu0 0.0
    %540 = vmatpush1.msra.mxu0 %v251
    %541 = vmatprep.subr.mxu0 0.0
    %542 = vmatpush2.msra.mxu0 0.0
    %543 = vmatprep.subr.mxu0 0.0
    %544 = vmatpush2.msra.mxu0 0.0
    %545 = vmatprep.subr.mxu0 0.0
    %546 = vmatpush2.msra.mxu0 0.0
    %547 = vmatprep.subr.mxu0 0.0
    %548 = vmatpush2.msra.mxu0 0.0
    %549 = vmatprep.subr.mxu0 0.0
    %550 = vmatpush2.msra.mxu0 0.0
    %551 = vmatprep.subr.mxu0 0.0
    %552 = vmatpush2.msra.mxu0 0.0
    %553 = vmatprep.subr.mxu0 0.0
    %554 = vmatpush2.msra.mxu0 0.0
    %555 = vmatprep.subr.mxu0 0.0
    %556 = vmatpush2.msra.mxu0 0.0
    %557 = vmatprep.subr.mxu0 0.0
    %558 = vmatpush2.msra.mxu0 0.0
    %559 = vmatprep.subr.mxu0 0.0
    %560 = vmatpush2.msra.mxu0 0.0
    %561 = vmatprep.subr.mxu0 0.0
    %562 = vmatpush2.msra.mxu0 0.0
    %563 = vmatprep.subr.mxu0 0.0
    %564 = vmatpush2.msra.mxu0 0.0
    %565 = vmatprep.subr.mxu0 0.0
    %566 = vmatpush2.msra.mxu0 0.0
    %567 = vmatprep.subr.mxu0 0.0
    %568 = vmatpush2.msra.mxu0 0.0
    %569 = vmatprep.subr.mxu0 0.0
    %570 = vmatpush2.msra.mxu0 0.0
    %571 = vmatprep.subr.mxu0 0.0
    %572 = vmatpush2.msra.mxu0 0.0
    %573 = vmatprep.mubr.f32.mxu0 0.0
    %574 = vmatmul.mubr.f32.gmra.mxu0 %v507
    %v575 = vpop.f32.mrf.mxu0
    %v576 = vadd.f32 0.0, %v575
    %v577 = vpop.f32.mrf.mxu0
    %578 = vdwg.mxu0
    %v580 = vsel %vm260, %v503, 0
    %v583 = vsel %vm260, %v576, 0
    %585 = vmatprep.subr.mxu0 0.0
    %586 = vmatpush1.msra.mxu0 0.0
    %587 = vmatprep.subr.mxu0 0.0
    %588 = vmatpush1.msra.mxu0 0.0
    %589 = vmatprep.subr.mxu0 0.0
    %590 = vmatpush1.msra.mxu0 0.0
    %591 = vmatprep.subr.mxu0 0.0
    %592 = vmatpush1.msra.mxu0 0.0
    %593 = vmatprep.subr.mxu0 0.0
    %594 = vmatpush1.msra.mxu0 0.0
    %595 = vmatprep.subr.mxu0 0.0
    %596 = vmatpush1.msra.mxu0 0.0
    %597 = vmatprep.subr.mxu0 0.0
    %598 = vmatpush1.msra.mxu0 0.0
    %599 = vmatprep.subr.mxu0 0.0
    %600 = vmatpush1.msra.mxu0 0.0
    %601 = vmatprep.subr.mxu0 0.0
    %602 = vmatpush1.msra.mxu0 0.0
    %603 = vmatprep.subr.mxu0 0.0
    %604 = vmatpush1.msra.mxu0 0.0
    %605 = vmatprep.subr.mxu0 0.0
    %606 = vmatpush1.msra.mxu0 0.0
    %607 = vmatprep.subr.mxu0 0.0
    %608 = vmatpush1.msra.mxu0 0.0
    %609 = vmatprep.subr.mxu0 0.0
    %610 = vmatpush1.msra.mxu0 0.0
    %611 = vmatprep.subr.mxu0 0.0
    %612 = vmatpush1.msra.mxu0 0.0
    %613 = vmatprep.subr.mxu0 0.0
    %614 = vmatpush1.msra.mxu0 %v256
    %615 = vmatprep.subr.mxu0 0.0
    %616 = vmatpush1.msra.mxu0 %v255
    %617 = vmatprep.subr.mxu0 0.0
    %618 = vmatpush2.msra.mxu0 0.0
    %619 = vmatprep.subr.mxu0 0.0
    %620 = vmatpush2.msra.mxu0 0.0
    %621 = vmatprep.subr.mxu0 0.0
    %622 = vmatpush2.msra.mxu0 0.0
    %623 = vmatprep.subr.mxu0 0.0
    %624 = vmatpush2.msra.mxu0 0.0
    %625 = vmatprep.subr.mxu0 0.0
    %626 = vmatpush2.msra.mxu0 0.0
    %627 = vmatprep.subr.mxu0 0.0
    %628 = vmatpush2.msra.mxu0 0.0
    %629 = vmatprep.subr.mxu0 0.0
    %630 = vmatpush2.msra.mxu0 0.0
    %631 = vmatprep.subr.mxu0 0.0
    %632 = vmatpush2.msra.mxu0 0.0
    %633 = vmatprep.subr.mxu0 0.0
    %634 = vmatpush2.msra.mxu0 0.0
    %635 = vmatprep.subr.mxu0 0.0
    %636 = vmatpush2.msra.mxu0 0.0
    %637 = vmatprep.subr.mxu0 0.0
    %638 = vmatpush2.msra.mxu0 0.0
    %639 = vmatprep.subr.mxu0 0.0
    %640 = vmatpush2.msra.mxu0 0.0
    %641 = vmatprep.subr.mxu0 0.0
    %642 = vmatpush2.msra.mxu0 0.0
    %643 = vmatprep.subr.mxu0 0.0
    %644 = vmatpush2.msra.mxu0 0.0
    %645 = vmatprep.subr.mxu0 0.0
    %646 = vmatpush2.msra.mxu0 0.0
    %647 = vmatprep.subr.mxu0 0.0
    %648 = vmatpush2.msra.mxu0 0.0
    %649 = vmatprep.mubr.f32.mxu0 0.0
    %650 = vmatmul.mubr.f32.gmra.mxu0 %v580
    %v651 = vpop.f32.mrf.mxu0
    %v652 = vadd.f32 0.0, %v651
    %v653 = vpop.f32.mrf.mxu0
    %654 = vmatprep.mubr.f32.mxu0 0.0
    %655 = vmatmul.mubr.f32.gmra.mxu0 %v583
    %v656 = vpop.f32.mrf.mxu0
    %v657 = vadd.f32 0.0, %v656
    %v658 = vpop.f32.mrf.mxu0
    %659 = vdwg.mxu0
    %v660 = vadd.f32 %v259, %v652
    %v661 = vadd.f32 %v259, %v657
    %662 = vrot.lane.b32.xlu0 %v254, 112
    %v663 = vpop.permute.xlu0 %662
    %664 = vrot.lane.b32.xlu0 %v167, 112
    %v665 = vpop.permute.xlu0 %664
    %v666 = vsel %vm260, %v663, 0
    %v668 = vsel %vm260, %v665, 0
    %670 = vmatprep.subr.mxu0 0.0
    %671 = vmatpush1.xpose.msra.mxu0 0.0
    %672 = vmatprep.subr.mxu0 0.0
    %673 = vmatpush1.xpose.msra.mxu0 0.0
    %674 = vmatprep.subr.mxu0 0.0
    %675 = vmatpush1.xpose.msra.mxu0 0.0
    %676 = vmatprep.subr.mxu0 0.0
    %677 = vmatpush1.xpose.msra.mxu0 0.0
    %678 = vmatprep.subr.mxu0 0.0
    %679 = vmatpush1.xpose.msra.mxu0 0.0
    %680 = vmatprep.subr.mxu0 0.0
    %681 = vmatpush1.xpose.msra.mxu0 0.0
    %682 = vmatprep.subr.mxu0 0.0
    %683 = vmatpush1.xpose.msra.mxu0 0.0
    %684 = vmatprep.subr.mxu0 0.0
    %685 = vmatpush1.xpose.msra.mxu0 0.0
    %686 = vmatprep.subr.mxu0 0.0
    %687 = vmatpush1.xpose.msra.mxu0 0.0
    %688 = vmatprep.subr.mxu0 0.0
    %689 = vmatpush1.xpose.msra.mxu0 0.0
    %690 = vmatprep.subr.mxu0 0.0
    %691 = vmatpush1.xpose.msra.mxu0 0.0
    %692 = vmatprep.subr.mxu0 0.0
    %693 = vmatpush1.xpose.msra.mxu0 0.0
    %694 = vmatprep.subr.mxu0 0.0
    %695 = vmatpush1.xpose.msra.mxu0 0.0
    %696 = vmatprep.subr.mxu0 0.0
    %697 = vmatpush1.xpose.msra.mxu0 0.0
    %698 = vmatprep.subr.mxu0 0.0
    %699 = vmatpush1.xpose.msra.mxu0 0.0
    %700 = vmatprep.subr.mxu0 0.0
    %701 = vmatpush1.xpose.msra.mxu0 %v668
    %702 = vmatprep.subr.mxu0 0.0
    %703 = vmatpush2.xpose.msra.mxu0 0.0
    %704 = vmatprep.subr.mxu0 0.0
    %705 = vmatpush2.xpose.msra.mxu0 0.0
    %706 = vmatprep.subr.mxu0 0.0
    %707 = vmatpush2.xpose.msra.mxu0 0.0
    %708 = vmatprep.subr.mxu0 0.0
    %709 = vmatpush2.xpose.msra.mxu0 0.0
    %710 = vmatprep.subr.mxu0 0.0
    %711 = vmatpush2.xpose.msra.mxu0 0.0
    %712 = vmatprep.subr.mxu0 0.0
    %713 = vmatpush2.xpose.msra.mxu0 0.0
    %714 = vmatprep.subr.mxu0 0.0
    %715 = vmatpush2.xpose.msra.mxu0 0.0
    %716 = vmatprep.subr.mxu0 0.0
    %717 = vmatpush2.xpose.msra.mxu0 0.0
    %718 = vmatprep.subr.mxu0 0.0
    %719 = vmatpush2.xpose.msra.mxu0 0.0
    %720 = vmatprep.subr.mxu0 0.0
    %721 = vmatpush2.xpose.msra.mxu0 0.0
    %722 = vmatprep.subr.mxu0 0.0
    %723 = vmatpush2.xpose.msra.mxu0 0.0
    %724 = vmatprep.subr.mxu0 0.0
    %725 = vmatpush2.xpose.msra.mxu0 0.0
    %726 = vmatprep.subr.mxu0 0.0
    %727 = vmatpush2.xpose.msra.mxu0 0.0
    %728 = vmatprep.subr.mxu0 0.0
    %729 = vmatpush2.xpose.msra.mxu0 0.0
    %730 = vmatprep.subr.mxu0 0.0
    %731 = vmatpush2.xpose.msra.mxu0 0.0
    %732 = vmatprep.subr.mxu0 0.0
    %733 = vmatpush2.xpose.msra.mxu0 0.0
    %734 = vmatprep.mubr.f32.mxu0 0.0
    %735 = vmatmul.mubr.f32.gmra.mxu0 %v666
    %v736 = vpop.f32.mrf.mxu0
    %v737 = vadd.f32 0.0, %v736
    %v738 = vpop.f32.mrf.mxu0
    %739 = vdwg.mxu0
    %740 = vrot.lane.b32.xlu0 %v172, 112
    %v741 = vpop.permute.xlu0 %740
    %v742 = vsel %vm260, %v741, 0
    %744 = vmatprep.subr.mxu0 0.0
    %745 = vmatpush1.xpose.msra.mxu0 0.0
    %746 = vmatprep.subr.mxu0 0.0
    %747 = vmatpush1.xpose.msra.mxu0 0.0
    %748 = vmatprep.subr.mxu0 0.0
    %749 = vmatpush1.xpose.msra.mxu0 0.0
    %750 = vmatprep.subr.mxu0 0.0
    %751 = vmatpush1.xpose.msra.mxu0 0.0
    %752 = vmatprep.subr.mxu0 0.0
    %753 = vmatpush1.xpose.msra.mxu0 0.0
    %754 = vmatprep.subr.mxu0 0.0
    %755 = vmatpush1.xpose.msra.mxu0 0.0
    %756 = vmatprep.subr.mxu0 0.0
    %757 = vmatpush1.xpose.msra.mxu0 0.0
    %758 = vmatprep.subr.mxu0 0.0
    %759 = vmatpush1.xpose.msra.mxu0 0.0
    %760 = vmatprep.subr.mxu0 0.0
    %761 = vmatpush1.xpose.msra.mxu0 0.0
    %762 = vmatprep.subr.mxu0 0.0
    %763 = vmatpush1.xpose.msra.mxu0 0.0
    %764 = vmatprep.subr.mxu0 0.0
    %765 = vmatpush1.xpose.msra.mxu0 0.0
    %766 = vmatprep.subr.mxu0 0.0
    %767 = vmatpush1.xpose.msra.mxu0 0.0
    %768 = vmatprep.subr.mxu0 0.0
    %769 = vmatpush1.xpose.msra.mxu0 0.0
    %770 = vmatprep.subr.mxu0 0.0
    %771 = vmatpush1.xpose.msra.mxu0 0.0
    %772 = vmatprep.subr.mxu0 0.0
    %773 = vmatpush1.xpose.msra.mxu0 0.0
    %774 = vmatprep.subr.mxu0 0.0
    %775 = vmatpush1.xpose.msra.mxu0 %v742
    %776 = vmatprep.subr.mxu0 0.0
    %777 = vmatpush2.xpose.msra.mxu0 0.0
    %778 = vmatprep.subr.mxu0 0.0
    %779 = vmatpush2.xpose.msra.mxu0 0.0
    %780 = vmatprep.subr.mxu0 0.0
    %781 = vmatpush2.xpose.msra.mxu0 0.0
    %782 = vmatprep.subr.mxu0 0.0
    %783 = vmatpush2.xpose.msra.mxu0 0.0
    %784 = vmatprep.subr.mxu0 0.0
    %785 = vmatpush2.xpose.msra.mxu0 0.0
    %786 = vmatprep.subr.mxu0 0.0
    %787 = vmatpush2.xpose.msra.mxu0 0.0
    %788 = vmatprep.subr.mxu0 0.0
    %789 = vmatpush2.xpose.msra.mxu0 0.0
    %790 = vmatprep.subr.mxu0 0.0
    %791 = vmatpush2.xpose.msra.mxu0 0.0
    %792 = vmatprep.subr.mxu0 0.0
    %793 = vmatpush2.xpose.msra.mxu0 0.0
    %794 = vmatprep.subr.mxu0 0.0
    %795 = vmatpush2.xpose.msra.mxu0 0.0
    %796 = vmatprep.subr.mxu0 0.0
    %797 = vmatpush2.xpose.msra.mxu0 0.0
    %798 = vmatprep.subr.mxu0 0.0
    %799 = vmatpush2.xpose.msra.mxu0 0.0
    %800 = vmatprep.subr.mxu0 0.0
    %801 = vmatpush2.xpose.msra.mxu0 0.0
    %802 = vmatprep.subr.mxu0 0.0
    %803 = vmatpush2.xpose.msra.mxu0 0.0
    %804 = vmatprep.subr.mxu0 0.0
    %805 = vmatpush2.xpose.msra.mxu0 0.0
    %806 = vmatprep.subr.mxu0 0.0
    %807 = vmatpush2.xpose.msra.mxu0 0.0
    %808 = vmatprep.mubr.f32.mxu0 0.0
    %809 = vmatmul.mubr.f32.gmra.mxu0 %v666
    %v810 = vpop.f32.mrf.mxu0
    %v811 = vadd.f32 0.0, %v810
    %v812 = vpop.f32.mrf.mxu0
    %813 = vdwg.mxu0
    %v814 = vsel %vm410, %v737, -inf
    %815 = vmax.xlane.f32.xlu0 %v814
    %v816 = vpop.xlane.xlu0 %815
    %v817 = vsel %vm410, %v811, -inf
    %818 = vmax.xlane.f32.xlu0 %v817
    %v819 = vpop.xlane.xlu0 %818
    %v820 = vsub.f32 %v737, %v816
    %v821 = vsub.f32 %v811, %v819
    %v822 = vmul.f32 %v820, 1.442695
    %v823 = vpow.pop %v822
    %v824 = vmul.f32 %v821, 1.442695
    %v825 = vpow.pop %v824
    %v826 = vsel %vm410, %v823, 0.0
    %827 = vadd.xlane.f32.xlu0 %v826
    %v828 = vpop.xlane.xlu0 %827
    %v829 = vsel %vm410, %v825, 0.0
    %830 = vadd.xlane.f32.xlu0 %v829
    %v831 = vpop.xlane.xlu0 %830
    %v832 = vrcp.pop %v828
    %v833 = vrcp.pop %v831
    %v834 = vmul.f32 %v823, %v832
    %v835 = vmul.f32 %v825, %v833
    %837 = vrot.lane.b32.xlu0 %v246, 112
    %v838 = vpop.permute.xlu0 %837
    %v841 = vsel %vm410, %v834, 0
    %843 = vmatprep.subr.mxu0 0.0
    %844 = vmatpush1.msra.mxu0 0.0
    %845 = vmatprep.subr.mxu0 0.0
    %846 = vmatpush1.msra.mxu0 0.0
    %847 = vmatprep.subr.mxu0 0.0
    %848 = vmatpush1.msra.mxu0 0.0
    %849 = vmatprep.subr.mxu0 0.0
    %850 = vmatpush1.msra.mxu0 0.0
    %851 = vmatprep.subr.mxu0 0.0
    %852 = vmatpush1.msra.mxu0 0.0
    %853 = vmatprep.subr.mxu0 0.0
    %854 = vmatpush1.msra.mxu0 0.0
    %855 = vmatprep.subr.mxu0 0.0
    %856 = vmatpush1.msra.mxu0 0.0
    %857 = vmatprep.subr.mxu0 0.0
    %858 = vmatpush1.msra.mxu0 0.0
    %859 = vmatprep.subr.mxu0 0.0
    %860 = vmatpush1.msra.mxu0 0.0
    %861 = vmatprep.subr.mxu0 0.0
    %862 = vmatpush1.msra.mxu0 0.0
    %863 = vmatprep.subr.mxu0 0.0
    %864 = vmatpush1.msra.mxu0 0.0
    %865 = vmatprep.subr.mxu0 0.0
    %866 = vmatpush1.msra.mxu0 0.0
    %867 = vmatprep.subr.mxu0 0.0
    %868 = vmatpush1.msra.mxu0 0.0
    %869 = vmatprep.subr.mxu0 0.0
    %870 = vmatpush1.msra.mxu0 0.0
    %871 = vmatprep.subr.mxu0 0.0
    %872 = vmatpush1.msra.mxu0 0.0
    %873 = vmatprep.subr.mxu0 0.0
    %874 = vmatpush1.msra.mxu0 %v838
    %875 = vmatprep.subr.mxu0 0.0
    %876 = vmatpush2.msra.mxu0 0.0
    %877 = vmatprep.subr.mxu0 0.0
    %878 = vmatpush2.msra.mxu0 0.0
    %879 = vmatprep.subr.mxu0 0.0
    %880 = vmatpush2.msra.mxu0 0.0
    %881 = vmatprep.subr.mxu0 0.0
    %882 = vmatpush2.msra.mxu0 0.0
    %883 = vmatprep.subr.mxu0 0.0
    %884 = vmatpush2.msra.mxu0 0.0
    %885 = vmatprep.subr.mxu0 0.0
    %886 = vmatpush2.msra.mxu0 0.0
    %887 = vmatprep.subr.mxu0 0.0
    %888 = vmatpush2.msra.mxu0 0.0
    %889 = vmatprep.subr.mxu0 0.0
    %890 = vmatpush2.msra.mxu0 0.0
    %891 = vmatprep.subr.mxu0 0.0
    %892 = vmatpush2.msra.mxu0 0.0
    %893 = vmatprep.subr.mxu0 0.0
    %894 = vmatpush2.msra.mxu0 0.0
    %895 = vmatprep.subr.mxu0 0.0
    %896 = vmatpush2.msra.mxu0 0.0
    %897 = vmatprep.subr.mxu0 0.0
    %898 = vmatpush2.msra.mxu0 0.0
    %899 = vmatprep.subr.mxu0 0.0
    %900 = vmatpush2.msra.mxu0 0.0
    %901 = vmatprep.subr.mxu0 0.0
    %902 = vmatpush2.msra.mxu0 0.0
    %903 = vmatprep.subr.mxu0 0.0
    %904 = vmatpush2.msra.mxu0 0.0
    %905 = vmatprep.subr.mxu0 0.0
    %906 = vmatpush2.msra.mxu0 0.0
    %907 = vmatprep.mubr.f32.mxu0 0.0
    %908 = vmatmul.mubr.f32.gmra.mxu0 %v841
    %v909 = vpop.f32.mrf.mxu0
    %v910 = vadd.f32 0.0, %v909
    %v911 = vpop.f32.mrf.mxu0
    %912 = vdwg.mxu0
    %914 = vrot.lane.b32.xlu0 %v251, 112
    %v915 = vpop.permute.xlu0 %914
    %v918 = vsel %vm410, %v835, 0
    %920 = vmatprep.subr.mxu0 0.0
    %921 = vmatpush1.msra.mxu0 0.0
    %922 = vmatprep.subr.mxu0 0.0
    %923 = vmatpush1.msra.mxu0 0.0
    %924 = vmatprep.subr.mxu0 0.0
    %925 = vmatpush1.msra.mxu0 0.0
    %926 = vmatprep.subr.mxu0 0.0
    %927 = vmatpush1.msra.mxu0 0.0
    %928 = vmatprep.subr.mxu0 0.0
    %929 = vmatpush1.msra.mxu0 0.0
    %930 = vmatprep.subr.mxu0 0.0
    %931 = vmatpush1.msra.mxu0 0.0
    %932 = vmatprep.subr.mxu0 0.0
    %933 = vmatpush1.msra.mxu0 0.0
    %934 = vmatprep.subr.mxu0 0.0
    %935 = vmatpush1.msra.mxu0 0.0
    %936 = vmatprep.subr.mxu0 0.0
    %937 = vmatpush1.msra.mxu0 0.0
    %938 = vmatprep.subr.mxu0 0.0
    %939 = vmatpush1.msra.mxu0 0.0
    %940 = vmatprep.subr.mxu0 0.0
    %941 = vmatpush1.msra.mxu0 0.0
    %942 = vmatprep.subr.mxu0 0.0
    %943 = vmatpush1.msra.mxu0 0.0
    %944 = vmatprep.subr.mxu0 0.0
    %945 = vmatpush1.msra.mxu0 0.0
    %946 = vmatprep.subr.mxu0 0.0
    %947 = vmatpush1.msra.mxu0 0.0
    %948 = vmatprep.subr.mxu0 0.0
    %949 = vmatpush1.msra.mxu0 0.0
    %950 = vmatprep.subr.mxu0 0.0
    %951 = vmatpush1.msra.mxu0 %v915
    %952 = vmatprep.subr.mxu0 0.0
    %953 = vmatpush2.msra.mxu0 0.0
    %954 = vmatprep.subr.mxu0 0.0
    %955 = vmatpush2.msra.mxu0 0.0
    %956 = vmatprep.subr.mxu0 0.0
    %957 = vmatpush2.msra.mxu0 0.0
    %958 = vmatprep.subr.mxu0 0.0
    %959 = vmatpush2.msra.mxu0 0.0
    %960 = vmatprep.subr.mxu0 0.0
    %961 = vmatpush2.msra.mxu0 0.0
    %962 = vmatprep.subr.mxu0 0.0
    %963 = vmatpush2.msra.mxu0 0.0
    %964 = vmatprep.subr.mxu0 0.0
    %965 = vmatpush2.msra.mxu0 0.0
    %966 = vmatprep.subr.mxu0 0.0
    %967 = vmatpush2.msra.mxu0 0.0
    %968 = vmatprep.subr.mxu0 0.0
    %969 = vmatpush2.msra.mxu0 0.0
    %970 = vmatprep.subr.mxu0 0.0
    %971 = vmatpush2.msra.mxu0 0.0
    %972 = vmatprep.subr.mxu0 0.0
    %973 = vmatpush2.msra.mxu0 0.0
    %974 = vmatprep.subr.mxu0 0.0
    %975 = vmatpush2.msra.mxu0 0.0
    %976 = vmatprep.subr.mxu0 0.0
    %977 = vmatpush2.msra.mxu0 0.0
    %978 = vmatprep.subr.mxu0 0.0
    %979 = vmatpush2.msra.mxu0 0.0
    %980 = vmatprep.subr.mxu0 0.0
    %981 = vmatpush2.msra.mxu0 0.0
    %982 = vmatprep.subr.mxu0 0.0
    %983 = vmatpush2.msra.mxu0 0.0
    %984 = vmatprep.mubr.f32.mxu0 0.0
    %985 = vmatmul.mubr.f32.gmra.mxu0 %v918
    %v986 = vpop.f32.mrf.mxu0
    %v987 = vadd.f32 0.0, %v986
    %v988 = vpop.f32.mrf.mxu0
    %989 = vdwg.mxu0
    %v991 = vsel %vm260, %v910, 0
    %v994 = vsel %vm260, %v987, 0
    %996 = vmatprep.subr.mxu0 0.0
    %997 = vmatpush1.msra.mxu0 0.0
    %998 = vmatprep.subr.mxu0 0.0
    %999 = vmatpush1.msra.mxu0 0.0
    %1000 = vmatprep.subr.mxu0 0.0
    %1001 = vmatpush1.msra.mxu0 0.0
    %1002 = vmatprep.subr.mxu0 0.0
    %1003 = vmatpush1.msra.mxu0 0.0
    %1004 = vmatprep.subr.mxu0 0.0
    %1005 = vmatpush1.msra.mxu0 0.0
    %1006 = vmatprep.subr.mxu0 0.0
    %1007 = vmatpush1.msra.mxu0 0.0
    %1008 = vmatprep.subr.mxu0 0.0
    %1009 = vmatpush1.msra.mxu0 0.0
    %1010 = vmatprep.subr.mxu0 0.0
    %1011 = vmatpush1.msra.mxu0 0.0
    %1012 = vmatprep.subr.mxu0 0.0
    %1013 = vmatpush1.msra.mxu0 0.0
    %1014 = vmatprep.subr.mxu0 0.0
    %1015 = vmatpush1.msra.mxu0 0.0
    %1016 = vmatprep.subr.mxu0 0.0
    %1017 = vmatpush1.msra.mxu0 0.0
    %1018 = vmatprep.subr.mxu0 0.0
    %1019 = vmatpush1.msra.mxu0 0.0
    %1020 = vmatprep.subr.mxu0 0.0
    %1021 = vmatpush1.msra.mxu0 0.0
    %1022 = vmatprep.subr.mxu0 0.0
    %1023 = vmatpush1.msra.mxu0 0.0
    %1024 = vmatprep.subr.mxu0 0.0
    %1025 = vmatpush1.msra.mxu0 %v258
    %1026 = vmatprep.subr.mxu0 0.0
    %1027 = vmatpush1.msra.mxu0 %v257
    %1028 = vmatprep.subr.mxu0 0.0
    %1029 = vmatpush2.msra.mxu0 0.0
    %1030 = vmatprep.subr.mxu0 0.0
    %1031 = vmatpush2.msra.mxu0 0.0
    %1032 = vmatprep.subr.mxu0 0.0
    %1033 = vmatpush2.msra.mxu0 0.0
    %1034 = vmatprep.subr.mxu0 0.0
    %1035 = vmatpush2.msra.mxu0 0.0
    %1036 = vmatprep.subr.mxu0 0.0
    %1037 = vmatpush2.msra.mxu0 0.0
    %1038 = vmatprep.subr.mxu0 0.0
    %1039 = vmatpush2.msra.mxu0 0.0
    %1040 = vmatprep.subr.mxu0 0.0
    %1041 = vmatpush2.msra.mxu0 0.0
    %1042 = vmatprep.subr.mxu0 0.0
    %1043 = vmatpush2.msra.mxu0 0.0
    %1044 = vmatprep.subr.mxu0 0.0
    %1045 = vmatpush2.msra.mxu0 0.0
    %1046 = vmatprep.subr.mxu0 0.0
    %1047 = vmatpush2.msra.mxu0 0.0
    %1048 = vmatprep.subr.mxu0 0.0
    %1049 = vmatpush2.msra.mxu0 0.0
    %1050 = vmatprep.subr.mxu0 0.0
    %1051 = vmatpush2.msra.mxu0 0.0
    %1052 = vmatprep.subr.mxu0 0.0
    %1053 = vmatpush2.msra.mxu0 0.0
    %1054 = vmatprep.subr.mxu0 0.0
    %1055 = vmatpush2.msra.mxu0 0.0
    %1056 = vmatprep.subr.mxu0 0.0
    %1057 = vmatpush2.msra.mxu0 0.0
    %1058 = vmatprep.subr.mxu0 0.0
    %1059 = vmatpush2.msra.mxu0 0.0
    %1060 = vmatprep.mubr.f32.mxu0 0.0
    %1061 = vmatmul.mubr.f32.gmra.mxu0 %v991
    %v1062 = vpop.f32.mrf.mxu0
    %v1063 = vadd.f32 0.0, %v1062
    %v1064 = vpop.f32.mrf.mxu0
    %1065 = vmatprep.mubr.f32.mxu0 0.0
    %1066 = vmatmul.mubr.f32.gmra.mxu0 %v994
    %v1067 = vpop.f32.mrf.mxu0
    %v1068 = vadd.f32 0.0, %v1067
    %v1069 = vpop.f32.mrf.mxu0
    %1070 = vdwg.mxu0
    %v1071 = vadd.f32 %v660, %v1063
    %v1072 = vadd.f32 %v661, %v1068
    %v1073 = vld [vmem:[%s6] sm:$0x1f]
    %v1074 = vsel %vm93, %v1071, 0.0
    %1075 = vadd.xlane.f32.xlu0 %v1074
    %v1076 = vpop.xlane.xlu0 %1075
    %v1077 = vsel %vm93, %v1072, 0.0
    %1078 = vadd.xlane.f32.xlu0 %v1077
    %v1079 = vpop.xlane.xlu0 %1078
    %v1080 = vrcp.pop 32.0
    %v1081 = vmul.f32 %v1076, %v1080
    %v1082 = vmul.f32 %v1079, %v1080
    %v1083 = vsub.f32 %v1071, %v1081
    %v1084 = vsub.f32 %v1072, %v1082
    %v1085 = vmul.f32 %v1083, %v1083
    %v1086 = vmul.f32 %v1084, %v1084
    %v1087 = vsel %vm93, %v1085, 0.0
    %1088 = vadd.xlane.f32.xlu0 %v1087
    %v1089 = vpop.xlane.xlu0 %1088
    %v1090 = vsel %vm93, %v1086, 0.0
    %1091 = vadd.xlane.f32.xlu0 %v1090
    %v1092 = vpop.xlane.xlu0 %1091
    %v1093 = vmul.f32 %v1089, %v1080
    %v1094 = vmul.f32 %v1092, %v1080
    %v1095 = vadd.f32 %v1093, 1e-06
    %v1096 = vadd.f32 %v1094, 1e-06
    %v1097 = vrsqrt.pop %v1095
    %v1098 = vrsqrt.pop %v1096
    %v1099 = vmul.f32 %v1083, %v1097
    %v1100 = vmul.f32 %v1084, %v1098
    %v1101 = vlaneseq
    %v1102 = vshrl.u32 %v1101, 7
    %v1103 = vsub.s32 0, %v1102
    %v1104 = vrot.slane %v1073, %v1103
    %v1105 = vmul.f32 %v1099, %v1104
    %v1106 = vmul.f32 %v1100, %v1104
    %v1107 = vlaneseq
    %v1108 = vshrl.u32 %v1107, 7
    %v1109 = vsub.s32 1, %v1108
    %v1110 = vrot.slane %v1073, %v1109
    %v1111 = vadd.f32 %v1105, %v1110
    %v1112 = vadd.f32 %v1106, %v1110
    %v1113 = vld [vmem:[#allocation8] sm:$0xff]
    %v1114 = vld [vmem:[#allocation8 + $0x8] sm:$0xff]
    %v1115 = vld [vmem:[#allocation8 + $0x10] sm:$0xff]
    %v1116 = vld [vmem:[#allocation8 + $0x18] sm:$0xff]
    %v1117 = vld [vmem:[%s8] sm:$0x1]
    %v1119 = vlaneseq
    %v1120 = vshrl.u32 %v1119, 7
    %v1121 = vsub.s32 0, %v1120
    %v1122 = vrot.slane %v1117, %v1121
    %v1125 = vsel %vm93, %v1111, 0
    %v1128 = vsel %vm93, %v1112, 0
    %1130 = vmatprep.subr.mxu0 0.0
    %1131 = vmatpush1.msra.mxu0 0.0
    %1132 = vmatprep.subr.mxu0 0.0
    %1133 = vmatpush1.msra.mxu0 0.0
    %1134 = vmatprep.subr.mxu0 0.0
    %1135 = vmatpush1.msra.mxu0 0.0
    %1136 = vmatprep.subr.mxu0 0.0
    %1137 = vmatpush1.msra.mxu0 0.0
    %1138 = vmatprep.subr.mxu0 0.0
    %1139 = vmatpush1.msra.mxu0 0.0
    %1140 = vmatprep.subr.mxu0 0.0
    %1141 = vmatpush1.msra.mxu0 0.0
    %1142 = vmatprep.subr.mxu0 0.0
    %1143 = vmatpush1.msra.mxu0 0.0
    %1144 = vmatprep.subr.mxu0 0.0
    %1145 = vmatpush1.msra.mxu0 0.0
    %1146 = vmatprep.subr.mxu0 0.0
    %1147 = vmatpush1.msra.mxu0 0.0
    %1148 = vmatprep.subr.mxu0 0.0
    %1149 = vmatpush1.msra.mxu0 0.0
    %1150 = vmatprep.subr.mxu0 0.0
    %1151 = vmatpush1.msra.mxu0 0.0
    %1152 = vmatprep.subr.mxu0 0.0
    %1153 = vmatpush1.msra.mxu0 0.0
    %1154 = vmatprep.subr.mxu0 0.0
    %1155 = vmatpush1.msra.mxu0 %v1116
    %1156 = vmatprep.subr.mxu0 0.0
    %1157 = vmatpush1.msra.mxu0 %v1115
    %1158 = vmatprep.subr.mxu0 0.0
    %1159 = vmatpush1.msra.mxu0 %v1114
    %1160 = vmatprep.subr.mxu0 0.0
    %1161 = vmatpush1.msra.mxu0 %v1113
    %1162 = vmatprep.subr.mxu0 0.0
    %1163 = vmatpush2.msra.mxu0 0.0
    %1164 = vmatprep.subr.mxu0 0.0
    %1165 = vmatpush2.msra.mxu0 0.0
    %1166 = vmatprep.subr.mxu0 0.0
    %1167 = vmatpush2.msra.mxu0 0.0
    %1168 = vmatprep.subr.mxu0 0.0
    %1169 = vmatpush2.msra.mxu0 0.0
    %1170 = vmatprep.subr.mxu0 0.0
    %1171 = vmatpush2.msra.mxu0 0.0
    %1172 = vmatprep.subr.mxu0 0.0
    %1173 = vmatpush2.msra.mxu0 0.0
    %1174 = vmatprep.subr.mxu0 0.0
    %1175 = vmatpush2.msra.mxu0 0.0
    %1176 = vmatprep.subr.mxu0 0.0
    %1177 = vmatpush2.msra.mxu0 0.0
    %1178 = vmatprep.subr.mxu0 0.0
    %1179 = vmatpush2.msra.mxu0 0.0
    %1180 = vmatprep.subr.mxu0 0.0
    %1181 = vmatpush2.msra.mxu0 0.0
    %1182 = vmatprep.subr.mxu0 0.0
    %1183 = vmatpush2.msra.mxu0 0.0
    %1184 = vmatprep.subr.mxu0 0.0
    %1185 = vmatpush2.msra.mxu0 0.0
    %1186 = vmatprep.subr.mxu0 0.0
    %1187 = vmatpush2.msra.mxu0 0.0
    %1188 = vmatprep.subr.mxu0 0.0
    %1189 = vmatpush2.msra.mxu0 0.0
    %1190 = vmatprep.subr.mxu0 0.0
    %1191 = vmatpush2.msra.mxu0 0.0
    %1192 = vmatprep.subr.mxu0 0.0
    %1193 = vmatpush2.msra.mxu0 0.0
    %1194 = vmatprep.mubr.f32.mxu0 0.0
    %1195 = vmatmul.mubr.f32.gmra.mxu0 %v1125
    %v1196 = vpop.f32.mrf.mxu0
    %v1197 = vadd.f32 %v1122, %v1196
    %v1198 = vpop.f32.mrf.mxu0
    %1199 = vmatprep.mubr.f32.mxu0 0.0
    %1200 = vmatmul.mubr.f32.gmra.mxu0 %v1128
    %v1201 = vpop.f32.mrf.mxu0
    %v1202 = vadd.f32 %v1122, %v1201
    %v1203 = vpop.f32.mrf.mxu0
    %1204 = vdwg.mxu0
    %v1205 = vmax.f32 %v1197, 0.0
    %v1206 = vmax.f32 %v1202, 0.0
    %v1207 = vld [vmem:[%s9] sm:$0xff]
    %v1208 = vld [vmem:[%s9 + $0x8] sm:$0xff]
    %v1209 = vld [vmem:[%s9 + $0x10] sm:$0xff]
    %v1210 = vld [vmem:[%s9 + $0x18] sm:$0xff]
    %v1211 = vld [vmem:[%s9 + $0x20] sm:$0xff]
    %v1212 = vld [vmem:[%s9 + $0x28] sm:$0xff]
    %v1213 = vld [vmem:[%s9 + $0x30] sm:$0xff]
    %v1214 = vld [vmem:[%s9 + $0x38] sm:$0xff]
    %v1215 = vlaneseq
    %v1216 = vshrl.u32 %v1215, 7
    %v1217 = vsub.s32 2, %v1216
    %v1218 = vrot.slane %v1073, %v1217
    %vm1219 = vcmask 523264
    %v1221 = vsel %vm1219, %v1205, 0
    %v1224 = vsel %vm1219, %v1206, 0
    %1226 = vmatprep.subr.mxu0 0.0
    %1227 = vmatpush1.msra.mxu0 0.0
    %1228 = vmatprep.subr.mxu0 0.0
    %1229 = vmatpush1.msra.mxu0 0.0
    %1230 = vmatprep.subr.mxu0 0.0
    %1231 = vmatpush1.msra.mxu0 0.0
    %1232 = vmatprep.subr.mxu0 0.0
    %1233 = vmatpush1.msra.mxu0 0.0
    %1234 = vmatprep.subr.mxu0 0.0
    %1235 = vmatpush1.msra.mxu0 0.0
    %1236 = vmatprep.subr.mxu0 0.0
    %1237 = vmatpush1.msra.mxu0 0.0
    %1238 = vmatprep.subr.mxu0 0.0
    %1239 = vmatpush1.msra.mxu0 0.0
    %1240 = vmatprep.subr.mxu0 0.0
    %1241 = vmatpush1.msra.mxu0 0.0
    %1242 = vmatprep.subr.mxu0 0.0
    %1243 = vmatpush1.msra.mxu0 %v1214
    %1244 = vmatprep.subr.mxu0 0.0
    %1245 = vmatpush1.msra.mxu0 %v1213
    %1246 = vmatprep.subr.mxu0 0.0
    %1247 = vmatpush1.msra.mxu0 %v1212
    %1248 = vmatprep.subr.mxu0 0.0
    %1249 = vmatpush1.msra.mxu0 %v1211
    %1250 = vmatprep.subr.mxu0 0.0
    %1251 = vmatpush1.msra.mxu0 %v1210
    %1252 = vmatprep.subr.mxu0 0.0
    %1253 = vmatpush1.msra.mxu0 %v1209
    %1254 = vmatprep.subr.mxu0 0.0
    %1255 = vmatpush1.msra.mxu0 %v1208
    %1256 = vmatprep.subr.mxu0 0.0
    %1257 = vmatpush1.msra.mxu0 %v1207
    %1258 = vmatprep.subr.mxu0 0.0
    %1259 = vmatpush2.msra.mxu0 0.0
    %1260 = vmatprep.subr.mxu0 0.0
    %1261 = vmatpush2.msra.mxu0 0.0
    %1262 = vmatprep.subr.mxu0 0.0
    %1263 = vmatpush2.msra.mxu0 0.0
    %1264 = vmatprep.subr.mxu0 0.0
    %1265 = vmatpush2.msra.mxu0 0.0
    %1266 = vmatprep.subr.mxu0 0.0
    %1267 = vmatpush2.msra.mxu0 0.0
    %1268 = vmatprep.subr.mxu0 0.0
    %1269 = vmatpush2.msra.mxu0 0.0
    %1270 = vmatprep.subr.mxu0 0.0
    %1271 = vmatpush2.msra.mxu0 0.0
    %1272 = vmatprep.subr.mxu0 0.0
    %1273 = vmatpush2.msra.mxu0 0.0
    %1274 = vmatprep.subr.mxu0 0.0
    %1275 = vmatpush2.msra.mxu0 0.0
    %1276 = vmatprep.subr.mxu0 0.0
    %1277 = vmatpush2.msra.mxu0 0.0
    %1278 = vmatprep.subr.mxu0 0.0
    %1279 = vmatpush2.msra.mxu0 0.0
    %1280 = vmatprep.subr.mxu0 0.0
    %1281 = vmatpush2.msra.mxu0 0.0
    %1282 = vmatprep.subr.mxu0 0.0
    %1283 = vmatpush2.msra.mxu0 0.0
    %1284 = vmatprep.subr.mxu0 0.0
    %1285 = vmatpush2.msra.mxu0 0.0
    %1286 = vmatprep.subr.mxu0 0.0
    %1287 = vmatpush2.msra.mxu0 0.0
    %1288 = vmatprep.subr.mxu0 0.0
    %1289 = vmatpush2.msra.mxu0 0.0
    %1290 = vmatprep.mubr.f32.mxu0 0.0
    %1291 = vmatmul.mubr.f32.gmra.mxu0 %v1221
    %v1292 = vpop.f32.mrf.mxu0
    %v1293 = vadd.f32 %v1218, %v1292
    %v1294 = vpop.f32.mrf.mxu0
    %1295 = vmatprep.mubr.f32.mxu0 0.0
    %1296 = vmatmul.mubr.f32.gmra.mxu0 %v1224
    %v1297 = vpop.f32.mrf.mxu0
    %v1298 = vadd.f32 %v1218, %v1297
    %v1299 = vpop.f32.mrf.mxu0
    %1300 = vdwg.mxu0
    %v1301 = vadd.f32 %v1293, %v1111
    %v1302 = vadd.f32 %v1298, %v1112
    %v1303 = vsel %vm93, %v1301, 0.0
    %1304 = vadd.xlane.f32.xlu0 %v1303
    %v1305 = vpop.xlane.xlu0 %1304
    %v1306 = vsel %vm93, %v1302, 0.0
    %1307 = vadd.xlane.f32.xlu0 %v1306
    %v1308 = vpop.xlane.xlu0 %1307
    %v1309 = vmul.f32 %v1305, %v1080
    %v1310 = vmul.f32 %v1308, %v1080
    %v1311 = vsub.f32 %v1301, %v1309
    %v1312 = vsub.f32 %v1302, %v1310
    %v1313 = vmul.f32 %v1311, %v1311
    %v1314 = vmul.f32 %v1312, %v1312
    %v1315 = vsel %vm93, %v1313, 0.0
    %1316 = vadd.xlane.f32.xlu0 %v1315
    %v1317 = vpop.xlane.xlu0 %1316
    %v1318 = vsel %vm93, %v1314, 0.0
    %1319 = vadd.xlane.f32.xlu0 %v1318
    %v1320 = vpop.xlane.xlu0 %1319
    %v1321 = vmul.f32 %v1317, %v1080
    %v1322 = vmul.f32 %v1320, %v1080
    %v1323 = vadd.f32 %v1321, 1e-06
    %v1324 = vadd.f32 %v1322, 1e-06
    %v1325 = vrsqrt.pop %v1323
    %v1326 = vrsqrt.pop %v1324
    %v1327 = vmul.f32 %v1311, %v1325
    %v1328 = vmul.f32 %v1312, %v1326
    %v1329 = vlaneseq
    %v1330 = vshrl.u32 %v1329, 7
    %v1331 = vsub.s32 3, %v1330
    %v1332 = vrot.slane %v1073, %v1331
    %v1333 = vmul.f32 %v1327, %v1332
    %v1334 = vmul.f32 %v1328, %v1332
    %v1335 = vlaneseq
    %v1336 = vshrl.u32 %v1335, 7
    %v1337 = vsub.s32 4, %v1336
    %v1338 = vrot.slane %v1073, %v1337
    %v1339 = vadd.f32 %v1333, %v1338
    %v1340 = vadd.f32 %v1334, %v1338
    %1341 = vst.msk [vmem:[#allocation10] sm:$0xff] %vm93, %v1339
    %1342 = vst.msk [vmem:[#allocation10 + $0x8] sm:$0xff] %vm93, %v1340
    // Predicated region
    $region58: #{tpu_custom_call.1} parent=1 // pred_check
      _
    $region59: #{tpu_custom_call.1} parent=1 // pred_check_branch
      %1344 = sbr.rel (0) target = $region61
    $region60: #{tpu_custom_call.1} parent=1 // pred_region
      %s1346 = ssub.s32 256, 256
      %1347 = vsyncadd [#allocation4], %s1346
      %s1348 = sshll.u32 [#allocation10], 4
      %s1349 = int_to_ptr.vmem [resolvable:$true] %s1348
      %1354 = dma.vmem_to_hbm [thread:$0]  %s1349, 256, %s10, [#allocation4], 128, 128, 8
    $region61: #{tpu_custom_call.1} parent=1 // pred_fallthru
      _
    // Predicated region
    $region62: #{tpu_custom_call.1} parent=1 // pred_check
      _
    $region63: #{tpu_custom_call.1} parent=1 // pred_check_branch
      %1356 = sbr.rel (0) target = $region65
    $region64: #{tpu_custom_call.1} parent=1 // pred_region
      %1357 = dma.done [#allocation4], 256
    $region65: #{tpu_custom_call.1} parent=1 // pred_fallthru
      _
    %1358 = vsyncpa [#allocation3], 1
    %1359 = vsyncpa [#allocation6], 1
    %1360 = vsyncpa [#allocation9], 1
    %1361 = vsyncpa [#allocation4], 1

</llo_original>
